<compile_context>
chip_gen: v7x
topology: tpu7x:2x2x1
jax: 0.10.0
libtpu: 0.0.40
codegen_flags: <defaults>
</compile_context>

<pallas_src>
import jax
import jax.numpy as jnp
from jax import lax
from jax.experimental import pallas as pl
from jax.experimental.pallas import tpu as pltpu


_MAX_ROW_TILE = 1024              # rows (edges or nodes) per grid step
_VMEM_LIMIT = 32 * 1024 * 1024    # safe on v7x (64 MiB), ample for these tiles


def _silu(x):
    return x * (1.0 / (1.0 + jnp.exp(-x)))


def _row_tile(n):
    return n if n <= _MAX_ROW_TILE else _MAX_ROW_TILE


def _cparams(n_grid_axes):
    return pltpu.CompilerParams(
        dimension_semantics=("parallel",) * n_grid_axes,
        vmem_limit_bytes=_VMEM_LIMIT,
    )


# ----------------------------------------------------------------------------
# embedding linear kernel (embedding_in / embedding_out), row-tiled
# ----------------------------------------------------------------------------
def _linear_kernel(x_ref, w_ref, b_ref, o_ref):
    o_ref[...] = (
        jnp.dot(x_ref[...], w_ref[...], preferred_element_type=jnp.float32)
        + b_ref[...]
    )


def linear_pallas(x, w, b):
    n, f_in = x.shape
    f_out = w.shape[1]
    tm = _row_tile(n)
    return pl.pallas_call(
        _linear_kernel,
        grid=(pl.cdiv(n, tm),),
        in_specs=[pl.BlockSpec((tm, f_in), lambda i: (i, 0)),
                  pl.BlockSpec((f_in, f_out), lambda i: (0, 0)),
                  pl.BlockSpec((1, f_out), lambda i: (0, 0))],
        out_specs=pl.BlockSpec((tm, f_out), lambda i: (i, 0)),
        out_shape=jax.ShapeDtypeStruct((n, f_out), jnp.float32),
        compiler_params=_cparams(1),
    )(x, w, b.reshape(1, f_out))


# ----------------------------------------------------------------------------
# edge kernel: fused multi-head edge MLP + LayerNorm + coord MLP gate
#   inputs:  h_row (te,H), h_col (te,H), geometry slab (te,G)
#   outputs: edge_feat (te,H), phi (te,1)
# The [h_row | h_col | geo] concat matmul is decomposed into three MXU dots,
# so no (te, F) concat slab is ever materialized.
# ----------------------------------------------------------------------------
def _edge_kernel(hr_ref, hc_ref, geo_ref,
                 w1hr_ref, w1hc_ref, w1g_ref, b1_ref,
                 w2_ref, b2_ref, gam_ref, bet_ref,
                 wc1_ref, bc1_ref, wc2_ref,
                 ef_ref, phi_ref):
    ln_eps = 1e-5

    # edge MLP layer 1 (fused heads)
    z = jnp.dot(hr_ref[...], w1hr_ref[...], preferred_element_type=jnp.float32)
    z = z + jnp.dot(hc_ref[...], w1hc_ref[...],
                    preferred_element_type=jnp.float32)
    z = z + jnp.dot(geo_ref[...], w1g_ref[...],
                    preferred_element_type=jnp.float32)
    hid = _silu(z + b1_ref[...])

    # edge MLP layer 2 (block-diagonal per-head W2) + LayerNorm(H)
    comb = (jnp.dot(hid, w2_ref[...], preferred_element_type=jnp.float32)
            + b2_ref[...])
    mean = jnp.mean(comb, axis=-1, keepdims=True)
    cent = comb - mean
    var = jnp.mean(cent * cent, axis=-1, keepdims=True)
    ef = cent * lax.rsqrt(var + ln_eps) * gam_ref[...] + bet_ref[...]
    ef_ref[...] = ef

    # coord MLP: width-1 head as a VPU multiply + lane reduce (no (H,1) matmul)
    chid = _silu(jnp.dot(ef, wc1_ref[...], preferred_element_type=jnp.float32)
                 + bc1_ref[...])
    phi_ref[...] = jnp.sum(chid * wc2_ref[...], axis=-1, keepdims=True)


def edge_mlp_pallas(h_row, h_col, geo, p):
    E, H = h_row.shape
    G = geo.shape[1]
    te = _row_tile(E)
    in_specs = [
        pl.BlockSpec((te, H), lambda i: (i, 0)),     # h_row
        pl.BlockSpec((te, H), lambda i: (i, 0)),     # h_col
        pl.BlockSpec((te, G), lambda i: (i, 0)),     # geometry slab
        pl.BlockSpec((H, H), lambda i: (0, 0)),      # w1_hr
        pl.BlockSpec((H, H), lambda i: (0, 0)),      # w1_hc
        pl.BlockSpec((G, H), lambda i: (0, 0)),      # w1_geo (zero-padded rows)
        pl.BlockSpec((1, H), lambda i: (0, 0)),      # b1
        pl.BlockSpec((H, H), lambda i: (0, 0)),      # w2 (block-diag heads)
        pl.BlockSpec((1, H), lambda i: (0, 0)),      # b2
        pl.BlockSpec((1, H), lambda i: (0, 0)),      # gamma
        pl.BlockSpec((1, H), lambda i: (0, 0)),      # beta
        pl.BlockSpec((H, H), lambda i: (0, 0)),      # wc1
        pl.BlockSpec((1, H), lambda i: (0, 0)),      # bc1
        pl.BlockSpec((1, H), lambda i: (0, 0)),      # wc2 as a row vector
    ]
    return pl.pallas_call(
        _edge_kernel,
        grid=(pl.cdiv(E, te),),
        in_specs=in_specs,
        out_specs=(pl.BlockSpec((te, H), lambda i: (i, 0)),
                   pl.BlockSpec((te, 1), lambda i: (i, 0))),
        out_shape=(jax.ShapeDtypeStruct((E, H), jnp.float32),
                   jax.ShapeDtypeStruct((E, 1), jnp.float32)),
        compiler_params=_cparams(1),
    )(h_row, h_col, geo,
      p['w1_hr'], p['w1_hc'], p['w1_geo'], p['b1'],
      p['w2'], p['b2'], p['gamma'], p['beta'],
      p['wc1'], p['bc1'], p['wc2_row'])


# ----------------------------------------------------------------------------
# node kernel: residual node MLP (in-place update of h via aliasing)
# ----------------------------------------------------------------------------
def _node_kernel(h_ref, agg_ref, wn1h_ref, wn1a_ref, bn1_ref, wn2_ref, bn2_ref,
                 h_out_ref):
    h = h_ref[...]
    # node_mlp([h, agg]) with the concat matmul decomposed
    z = (jnp.dot(h, wn1h_ref[...], preferred_element_type=jnp.float32)
         + jnp.dot(agg_ref[...], wn1a_ref[...],
                   preferred_element_type=jnp.float32)
         + bn1_ref[...])
    out = (jnp.dot(_silu(z), wn2_ref[...], preferred_element_type=jnp.float32)
           + bn2_ref[...])
    h_out_ref[...] = h + out                         # residual=True


def node_mlp_pallas(h, agg_h, p):
    N, H = h.shape
    tn = _row_tile(N)
    in_specs = [
        pl.BlockSpec((tn, H), lambda i: (i, 0)),     # h
        pl.BlockSpec((tn, H), lambda i: (i, 0)),     # agg_h
        pl.BlockSpec((H, H), lambda i: (0, 0)),      # wn1_h
        pl.BlockSpec((H, H), lambda i: (0, 0)),      # wn1_agg
        pl.BlockSpec((1, H), lambda i: (0, 0)),      # bn1
        pl.BlockSpec((H, H), lambda i: (0, 0)),      # wn2
        pl.BlockSpec((1, H), lambda i: (0, 0)),      # bn2
    ]
    return pl.pallas_call(
        _node_kernel,
        grid=(pl.cdiv(N, tn),),
        in_specs=in_specs,
        out_specs=pl.BlockSpec((tn, H), lambda i: (i, 0)),
        out_shape=jax.ShapeDtypeStruct((N, H), jnp.float32),
        input_output_aliases={0: 0},                 # h updated in place
        compiler_params=_cparams(1),
    )(h, agg_h, p['wn1_h'], p['wn1_agg'], p['bn1'], p['wn2'], p['bn2'])


# ----------------------------------------------------------------------------
# geometry slab (XLA, fuses with the edge gathers inside jit):
#   [radial | dist | dot | so3(9) | edge_attr | zero pad] -> (E, G_pad)
# ----------------------------------------------------------------------------
def _geometry_slab(coord, row, col, edge_attr, g_pad):
    eps, thr = 1e-8, 1e-6
    xi, xk = coord[row], coord[col]
    cd = xi - xk
    radial = jnp.sum(cd * cd, axis=-1, keepdims=True)
    dist = jnp.sqrt(radial)
    dotp = jnp.sum(xi * xk, axis=-1, keepdims=True)
    a = cd / (dist + eps)
    cp = jnp.cross(xi, xk)
    b = cp / (jnp.linalg.norm(cp, axis=-1, keepdims=True) + eps)
    c = jnp.cross(a, b)
    mask = ((jnp.linalg.norm(a, axis=-1) < thr)
            | (jnp.linalg.norm(b, axis=-1) < thr)
            | (jnp.linalg.norm(c, axis=-1) < thr))
    # torch.stack([a, b, c], dim=2).view(-1, 9) column order with eye fallback
    so3 = jnp.stack([a, b, c], axis=2).reshape(-1, 9)
    so3 = jnp.where(mask[:, None], jnp.eye(3, dtype=jnp.float32).reshape(9), so3)
    geo = jnp.concatenate([radial, dist, dotp, so3, edge_attr], axis=1)
    pad = g_pad - geo.shape[1]
    if pad:
        geo = jnp.pad(geo, ((0, 0), (0, pad)))
    return geo, cd


# ----------------------------------------------------------------------------
# E_GCL layer wrapper
# ----------------------------------------------------------------------------
def egcl_pallas(h, coord, row, col, edge_attr, p):
    N = h.shape[0]
    g_pad = p['w1_geo'].shape[0]

    # indexed gathers + geometry packing in XLA; all MLP compute in Pallas.
    geo, coord_diff = _geometry_slab(coord, row, col, edge_attr, g_pad)
    edge_feat, phi = edge_mlp_pallas(h[row], h[col], geo, p)

    # TODO(synk): data-dependent scatter-add stays in XLA (segment_sum); an
    # in-kernel version needs sorted edges + scalar-prefetched segment offsets.
    agg_h = jax.ops.segment_sum(edge_feat, row, num_segments=N)
    coord = coord + jax.ops.segment_sum(coord_diff * phi, row, num_segments=N)

    h = node_mlp_pallas(h, agg_h, p)
    return h, coord


# ----------------------------------------------------------------------------
# deterministic parameter init (mirrors the nn.Module __init__ shapes)
# ----------------------------------------------------------------------------
def _linear_init(key, fan_in, fan_out):
    kw, kb = jax.random.split(key)
    bound = 1.0 / (fan_in ** 0.5)
    w = jax.random.uniform(kw, (fan_in, fan_out), jnp.float32, -bound, bound)
    b = jax.random.uniform(kb, (fan_out,), jnp.float32, -bound, bound)
    return w, b


def init_egcl_params(key, hidden_nf, in_edge_nf, num_heads=4):
    H = hidden_nf
    Hh = H // num_heads
    G = 12 + in_edge_nf                    # radial + dist + dot + so3(9) + edge_attr
    G_pad = ((G + 7) // 8) * 8             # aligned MXU contraction
    F = 2 * H + G
    keys = jax.random.split(key, 2 * num_heads + 4)
    w1s, b1s, b2s = [], [], []
    W2 = jnp.zeros((H, H), jnp.float32)
    for i in range(num_heads):
        w1, b1 = _linear_init(keys[2 * i], F, Hh)
        w2, b2 = _linear_init(keys[2 * i + 1], Hh, Hh)
        w1s.append(w1)
        b1s.append(b1)
        b2s.append(b2)
        W2 = W2.at[i * Hh:(i + 1) * Hh, i * Hh:(i + 1) * Hh].set(w2)
    w1 = jnp.concatenate(w1s, axis=1)                     # (F, H) fused heads
    w1_geo = jnp.zeros((G_pad, H), jnp.float32).at[:G].set(w1[2 * H:])
    wn1, bn1 = _linear_init(keys[2 * num_heads + 0], 2 * H, H)
    wn2, bn2 = _linear_init(keys[2 * num_heads + 1], H, H)
    wc1, bc1 = _linear_init(keys[2 * num_heads + 2], H, H)
    bound = 0.001 * (6.0 / (H + 1)) ** 0.5                # xavier_uniform, gain=0.001
    wc2 = jax.random.uniform(keys[2 * num_heads + 3], (H, 1), jnp.float32,
                             -bound, bound)
    return dict(
        w1_hr=w1[:H], w1_hc=w1[H:2 * H], w1_geo=w1_geo,   # split host-side
        b1=jnp.concatenate(b1s).reshape(1, H),
        w2=W2,                                            # (H, H) block-diag
        b2=jnp.concatenate(b2s).reshape(1, H),
        gamma=jnp.ones((1, H), jnp.float32),              # LayerNorm init
        beta=jnp.zeros((1, H), jnp.float32),
        wn1_h=wn1[:H], wn1_agg=wn1[H:], bn1=bn1.reshape(1, H),
        wn2=wn2, bn2=bn2.reshape(1, H),
        wc1=wc1, bc1=bc1.reshape(1, H),
        wc2_row=wc2.reshape(1, H),
    )


def init_egnn_params(key, in_node_nf, hidden_nf, out_node_nf, in_edge_nf, n_layers):
    keys = jax.random.split(key, n_layers + 2)
    emb_in_w, emb_in_b = _linear_init(keys[0], in_node_nf, hidden_nf)
    emb_out_w, emb_out_b = _linear_init(keys[1], hidden_nf, out_node_nf)
    layers = [init_egcl_params(keys[2 + i], hidden_nf, in_edge_nf)
              for i in range(n_layers)]
    return dict(emb_in_w=emb_in_w, emb_in_b=emb_in_b,
                emb_out_w=emb_out_w, emb_out_b=emb_out_b,
                layers=layers)


# ----------------------------------------------------------------------------
# EGNN forward (gather/scatter/geometry glue in JAX, MLP compute in Pallas)
# ----------------------------------------------------------------------------
def egnn_forward(params, h, x, edges, edge_attr):
    row, col = edges[0], edges[1]
    h = linear_pallas(h, params['emb_in_w'], params['emb_in_b'])
    for lp in params['layers']:
        h, x = egcl_pallas(h, x, row, col, edge_attr, lp)
    h = linear_pallas(h, params['emb_out_w'], params['emb_out_b'])
    return h, x


# ----------------------------------------------------------------------------
# pure-JAX reference (mirrors the PyTorch semantics) for a sanity check
# ----------------------------------------------------------------------------
def egnn_reference(params, h, x, edges, edge_attr):
    row, col = edges[0], edges[1]
    N = h.shape[0]
    A = edge_attr.shape[1]
    seg = lambda d, i: jax.ops.segment_sum(d, i, num_segments=N)
    h = h @ params['emb_in_w'] + params['emb_in_b']
    for p in params['layers']:
        w1 = jnp.concatenate([p['w1_hr'], p['w1_hc'], p['w1_geo'][:12 + A]], axis=0)
        wn1 = jnp.concatenate([p['wn1_h'], p['wn1_agg']], axis=0)
        xi, xk = x[row], x[col]
        cd = xi - xk
        radial = jnp.sum(cd ** 2, -1, keepdims=True)
        dist = jnp.sqrt(radial)
        dp = jnp.sum(xi * xk, -1, keepdims=True)
        a = cd / (jnp.linalg.norm(cd, axis=1, keepdims=True) + 1e-8)
        cp = jnp.cross(xi, xk)
        b = cp / (jnp.linalg.norm(cp, axis=1, keepdims=True) + 1e-8)
        c = jnp.cross(a, b)
        mask = ((jnp.linalg.norm(a, axis=1) < 1e-6)
                | (jnp.linalg.norm(b, axis=1) < 1e-6)
                | (jnp.linalg.norm(c, axis=1) < 1e-6))
        so3 = jnp.stack([a, b, c], axis=2).reshape(-1, 9)
        so3 = jnp.where(mask[:, None], jnp.eye(3, dtype=jnp.float32).reshape(9), so3)
        feat = jnp.concatenate([h[row], h[col], radial, dist, dp, so3, edge_attr], 1)
        hid = jax.nn.silu(feat @ w1 + p['b1'])
        comb = hid @ p['w2'] + p['b2']
        mean = comb.mean(-1, keepdims=True)
        var = ((comb - mean) ** 2).mean(-1, keepdims=True)
        ef = (comb - mean) / jnp.sqrt(var + 1e-5) * p['gamma'] + p['beta']
        chid = jax.nn.silu(ef @ p['wc1'] + p['bc1'])
        x = x + seg(cd * (chid @ p['wc2_row'].T), row)
        nin = jnp.concatenate([h, seg(ef, row)], axis=1)
        h = h + (jax.nn.silu(nin @ wn1 + p['bn1']) @ p['wn2'] + p['bn2'])
    h = h @ params['emb_out_w'] + params['emb_out_b']
    return h, x


if __name__ == "__main__":
    key = jax.random.PRNGKey(0)
    in_node_nf, hidden_nf, out_node_nf, in_edge_nf = 6, 32, 5, 2
    n_layers = 3
    N, E = 8, 16

    k1, k2, k3, k4, k5, kp = jax.random.split(key, 6)
    h0 = jax.random.normal(k1, (N, in_node_nf), jnp.float32)
    x0 = jax.random.normal(k2, (N, 3), jnp.float32)
    row = jax.random.randint(k3, (E,), 0, N)
    col = (row + 1 + jax.random.randint(k4, (E,), 0, N - 1)) % N   # no self-loops
    edges = jnp.stack([row, col]).astype(jnp.int32)
    edge_attr = jax.random.normal(k5, (E, in_edge_nf), jnp.float32)

    params = init_egnn_params(kp, in_node_nf, hidden_nf, out_node_nf,
                              in_edge_nf, n_layers)

    fwd = jax.jit(egnn_forward)
    h_out, x_out = fwd(params, h0, x0, edges, edge_attr)
    jax.block_until_ready((h_out, x_out))

    h_ref, x_ref = egnn_reference(params, h0, x0, edges, edge_attr)
    assert h_out.shape == (N, out_node_nf) and x_out.shape == (N, 3)
    assert jnp.allclose(h_out, h_ref, atol=1e-2, rtol=1e-2), \
        float(jnp.max(jnp.abs(h_out - h_ref)))
    assert jnp.allclose(x_out, x_ref, atol=1e-2, rtol=1e-2), \
        float(jnp.max(jnp.abs(x_out - x_ref)))

    print("KERNEL_OK")
</pallas_src>

<mosaic_0001>
module attributes {stable_mosaic.version = 11 : i64} {
  func.func @_linear_kernel(%arg0: i32, %arg1: memref<8x6xf32, #tpu.memory_space<vmem>>, %arg2: memref<6x32xf32, #tpu.memory_space<vmem>>, %arg3: memref<1x32xf32, #tpu.memory_space<vmem>>, %arg4: memref<8x32xf32, #tpu.memory_space<vmem>>) attributes {dimension_semantics = [#tpu.dimension_semantics<parallel>], iteration_bounds = array<i64: 1>, scalar_prefetch = 0 : i64, scratch_operands = 0 : i64, tpu.core_type = #tpu.core_type<tc>, window_params = [{transform_indices = @transform_0, window_bounds = array<i64: 8, 6>}, {pipeline_mode = #tpu.pipeline_mode<synchronous>, transform_indices = @transform_1, window_bounds = array<i64: 6, 32>}, {pipeline_mode = #tpu.pipeline_mode<synchronous>, transform_indices = @transform_2, window_bounds = array<i64: 1, 32>}, {transform_indices = @transform_3, window_bounds = array<i64: 8, 32>}]} {
    %c0 = arith.constant 0 : index
    %c0_0 = arith.constant 0 : index
    %0 = vector.load %arg1[%c0, %c0_0] : memref<8x6xf32, #tpu.memory_space<vmem>>, vector<8x6xf32>
    %c0_1 = arith.constant 0 : index
    %c0_2 = arith.constant 0 : index
    %1 = vector.load %arg2[%c0_1, %c0_2] : memref<6x32xf32, #tpu.memory_space<vmem>>, vector<6x32xf32>
    %cst = arith.constant dense<0.000000e+00> : vector<8x32xf32>
    %2 = tpu.matmul %0, %1, %cst {dimension_numbers = #tpu.dot_dimension_numbers<[1], [0], [0], [1], [0, 0, 1, 1], [], []>} : vector<8x6xf32>, vector<6x32xf32>, vector<8x32xf32> -> vector<8x32xf32>
    %c0_3 = arith.constant 0 : index
    %c0_4 = arith.constant 0 : index
    %3 = vector.load %arg3[%c0_3, %c0_4] : memref<1x32xf32, #tpu.memory_space<vmem>>, vector<1x32xf32>
    %4 = vector.broadcast %3 : vector<1x32xf32> to vector<8x32xf32>
    %5 = arith.addf %2, %4 : vector<8x32xf32>
    %c0_5 = arith.constant 0 : index
    %c0_6 = arith.constant 0 : index
    %6 = vector.load %arg4[%c0_5, %c0_6] : memref<8x32xf32, #tpu.memory_space<vmem>>, vector<8x32xf32>
    tpu.vector_store %arg4[%c0_5, %c0_6], %5 {strides = array<i32>} : memref<8x32xf32, #tpu.memory_space<vmem>>, vector<8x32xf32>,
    return
  }
  func.func @transform_0(%arg0: i32) -> (i32, i32) {
    %c0_i32 = arith.constant 0 : i32
    %c0_i32_0 = arith.constant 0 : i32
    return %arg0, %c0_i32 : i32, i32
  }
  func.func @transform_1(%arg0: i32) -> (i32, i32) {
    %c0_i32 = arith.constant 0 : i32
    %c0_i32_0 = arith.constant 0 : i32
    %c0_i32_1 = arith.constant 0 : i32
    return %c0_i32, %c0_i32_0 : i32, i32
  }
  func.func @transform_2(%arg0: i32) -> (i32, i32) {
    %c0_i32 = arith.constant 0 : i32
    %c0_i32_0 = arith.constant 0 : i32
    %c0_i32_1 = arith.constant 0 : i32
    return %c0_i32, %c0_i32_0 : i32, i32
  }
  func.func @transform_3(%arg0: i32) -> (i32, i32) {
    %c0_i32 = arith.constant 0 : i32
    %c0_i32_0 = arith.constant 0 : i32
    return %arg0, %c0_i32 : i32, i32
  }
}

module attributes {stable_mosaic.version = 11 : i64} {
  func.func @_edge_kernel(%arg0: i32, %arg1: memref<16x32xf32, #tpu.memory_space<vmem>>, %arg2: memref<16x32xf32, #tpu.memory_space<vmem>>, %arg3: memref<16x16xf32, #tpu.memory_space<vmem>>, %arg4: memref<32x32xf32, #tpu.memory_space<vmem>>, %arg5: memref<32x32xf32, #tpu.memory_space<vmem>>, %arg6: memref<16x32xf32, #tpu.memory_space<vmem>>, %arg7: memref<1x32xf32, #tpu.memory_space<vmem>>, %arg8: memref<32x32xf32, #tpu.memory_space<vmem>>, %arg9: memref<1x32xf32, #tpu.memory_space<vmem>>, %arg10: memref<1x32xf32, #tpu.memory_space<vmem>>, %arg11: memref<1x32xf32, #tpu.memory_space<vmem>>, %arg12: memref<32x32xf32, #tpu.memory_space<vmem>>, %arg13: memref<1x32xf32, #tpu.memory_space<vmem>>, %arg14: memref<1x32xf32, #tpu.memory_space<vmem>>, %arg15: memref<16x32xf32, #tpu.memory_space<vmem>>, %arg16: memref<16x1xf32, #tpu.memory_space<vmem>>) attributes {dimension_semantics = [#tpu.dimension_semantics<parallel>], iteration_bounds = array<i64: 1>, scalar_prefetch = 0 : i64, scratch_operands = 0 : i64, tpu.core_type = #tpu.core_type<tc>, window_params = [{transform_indices = @transform_0, window_bounds = array<i64: 16, 32>}, {transform_indices = @transform_1, window_bounds = array<i64: 16, 32>}, {transform_indices = @transform_2, window_bounds = array<i64: 16, 16>}, {pipeline_mode = #tpu.pipeline_mode<synchronous>, transform_indices = @transform_3, window_bounds = array<i64: 32, 32>}, {pipeline_mode = #tpu.pipeline_mode<synchronous>, transform_indices = @transform_4, window_bounds = array<i64: 32, 32>}, {pipeline_mode = #tpu.pipeline_mode<synchronous>, transform_indices = @transform_5, window_bounds = array<i64: 16, 32>}, {pipeline_mode = #tpu.pipeline_mode<synchronous>, transform_indices = @transform_6, window_bounds = array<i64: 1, 32>}, {pipeline_mode = #tpu.pipeline_mode<synchronous>, transform_indices = @transform_7, window_bounds = array<i64: 32, 32>}, {pipeline_mode = #tpu.pipeline_mode<synchronous>, transform_indices = @transform_8, window_bounds = array<i64: 1, 32>}, {pipeline_mode = #tpu.pipeline_mode<synchronous>, transform_indices = @transform_9, window_bounds = array<i64: 1, 32>}, {pipeline_mode = #tpu.pipeline_mode<synchronous>, transform_indices = @transform_10, window_bounds = array<i64: 1, 32>}, {pipeline_mode = #tpu.pipeline_mode<synchronous>, transform_indices = @transform_11, window_bounds = array<i64: 32, 32>}, {pipeline_mode = #tpu.pipeline_mode<synchronous>, transform_indices = @transform_12, window_bounds = array<i64: 1, 32>}, {pipeline_mode = #tpu.pipeline_mode<synchronous>, transform_indices = @transform_13, window_bounds = array<i64: 1, 32>}, {transform_indices = @transform_14, window_bounds = array<i64: 16, 32>}, {transform_indices = @transform_15, window_bounds = array<i64: 16, 1>}]} {
    %c0 = arith.constant 0 : index
    %c0_0 = arith.constant 0 : index
    %0 = vector.load %arg1[%c0, %c0_0] : memref<16x32xf32, #tpu.memory_space<vmem>>, vector<16x32xf32>
    %c0_1 = arith.constant 0 : index
    %c0_2 = arith.constant 0 : index
    %1 = vector.load %arg4[%c0_1, %c0_2] : memref<32x32xf32, #tpu.memory_space<vmem>>, vector<32x32xf32>
    %cst = arith.constant dense<0.000000e+00> : vector<16x32xf32>
    %2 = tpu.matmul %0, %1, %cst {dimension_numbers = #tpu.dot_dimension_numbers<[1], [0], [0], [1], [0, 0, 1, 1], [], []>} : vector<16x32xf32>, vector<32x32xf32>, vector<16x32xf32> -> vector<16x32xf32>
    %c0_3 = arith.constant 0 : index
    %c0_4 = arith.constant 0 : index
    %3 = vector.load %arg2[%c0_3, %c0_4] : memref<16x32xf32, #tpu.memory_space<vmem>>, vector<16x32xf32>
    %c0_5 = arith.constant 0 : index
    %c0_6 = arith.constant 0 : index
    %4 = vector.load %arg5[%c0_5, %c0_6] : memref<32x32xf32, #tpu.memory_space<vmem>>, vector<32x32xf32>
    %cst_7 = arith.constant dense<0.000000e+00> : vector<16x32xf32>
    %5 = tpu.matmul %3, %4, %cst_7 {dimension_numbers = #tpu.dot_dimension_numbers<[1], [0], [0], [1], [0, 0, 1, 1], [], []>} : vector<16x32xf32>, vector<32x32xf32>, vector<16x32xf32> -> vector<16x32xf32>
    %6 = arith.addf %2, %5 : vector<16x32xf32>
    %c0_8 = arith.constant 0 : index
    %c0_9 = arith.constant 0 : index
    %7 = vector.load %arg3[%c0_8, %c0_9] : memref<16x16xf32, #tpu.memory_space<vmem>>, vector<16x16xf32>
    %c0_10 = arith.constant 0 : index
    %c0_11 = arith.constant 0 : index
    %8 = vector.load %arg6[%c0_10, %c0_11] : memref<16x32xf32, #tpu.memory_space<vmem>>, vector<16x32xf32>
    %cst_12 = arith.constant dense<0.000000e+00> : vector<16x32xf32>
    %9 = tpu.matmul %7, %8, %cst_12 {dimension_numbers = #tpu.dot_dimension_numbers<[1], [0], [0], [1], [0, 0, 1, 1], [], []>} : vector<16x16xf32>, vector<16x32xf32>, vector<16x32xf32> -> vector<16x32xf32>
    %10 = arith.addf %6, %9 : vector<16x32xf32>
    %c0_13 = arith.constant 0 : index
    %c0_14 = arith.constant 0 : index
    %11 = vector.load %arg7[%c0_13, %c0_14] : memref<1x32xf32, #tpu.memory_space<vmem>>, vector<1x32xf32>
    %12 = vector.broadcast %11 : vector<1x32xf32> to vector<16x32xf32>
    %13 = arith.addf %10, %12 : vector<16x32xf32>
    %cst_15 = arith.constant 0.000000e+00 : f32
    %14 = vector.broadcast %cst_15 : f32 to vector<16x32xf32>
    %15 = arith.subf %14, %13 : vector<16x32xf32>
    %16 = math.exp %15 : vector<16x32xf32>
    %cst_16 = arith.constant 1.000000e+00 : f32
    %17 = vector.broadcast %cst_16 : f32 to vector<16x32xf32>
    %18 = arith.addf %17, %16 : vector<16x32xf32>
    %cst_17 = arith.constant 1.000000e+00 : f32
    %19 = vector.broadcast %cst_17 : f32 to vector<16x32xf32>
    %20 = arith.divf %19, %18 : vector<16x32xf32>
    %21 = arith.mulf %13, %20 : vector<16x32xf32>
    %c0_18 = arith.constant 0 : index
    %c0_19 = arith.constant 0 : index
    %22 = vector.load %arg8[%c0_18, %c0_19] : memref<32x32xf32, #tpu.memory_space<vmem>>, vector<32x32xf32>
    %cst_20 = arith.constant dense<0.000000e+00> : vector<16x32xf32>
    %23 = tpu.matmul %21, %22, %cst_20 {dimension_numbers = #tpu.dot_dimension_numbers<[1], [0], [0], [1], [0, 0, 1, 1], [], []>} : vector<16x32xf32>, vector<32x32xf32>, vector<16x32xf32> -> vector<16x32xf32>
    %c0_21 = arith.constant 0 : index
    %c0_22 = arith.constant 0 : index
    %24 = vector.load %arg9[%c0_21, %c0_22] : memref<1x32xf32, #tpu.memory_space<vmem>>, vector<1x32xf32>
    %25 = vector.broadcast %24 : vector<1x32xf32> to vector<16x32xf32>
    %26 = arith.addf %23, %25 : vector<16x32xf32>
    %cst_23 = arith.constant dense<0.000000e+00> : vector<16xf32>
    %27 = vector.multi_reduction <add>, %26, %cst_23 [1] : vector<16x32xf32> to vector<16xf32>
    %28 = vector.shape_cast %27 : vector<16xf32> to vector<16x1xf32>
    %cst_24 = arith.constant 3.200000e+01 : f32
    %29 = vector.broadcast %cst_24 : f32 to vector<16x1xf32>
    %30 = arith.divf %28, %29 : vector<16x1xf32>
    %31 = vector.broadcast %30 : vector<16x1xf32> to vector<16x32xf32>
    %32 = arith.subf %26, %31 : vector<16x32xf32>
    %33 = arith.mulf %32, %32 : vector<16x32xf32>
    %cst_25 = arith.constant dense<0.000000e+00> : vector<16xf32>
    %34 = vector.multi_reduction <add>, %33, %cst_25 [1] : vector<16x32xf32> to vector<16xf32>
    %35 = vector.shape_cast %34 : vector<16xf32> to vector<16x1xf32>
    %cst_26 = arith.constant 3.200000e+01 : f32
    %36 = vector.broadcast %cst_26 : f32 to vector<16x1xf32>
    %37 = arith.divf %35, %36 : vector<16x1xf32>
    %cst_27 = arith.constant 9.99999974E-6 : f32
    %38 = vector.broadcast %cst_27 : f32 to vector<16x1xf32>
    %39 = arith.addf %37, %38 : vector<16x1xf32>
    %40 = math.rsqrt %39 : vector<16x1xf32>
    %41 = vector.broadcast %40 : vector<16x1xf32> to vector<16x32xf32>
    %42 = arith.mulf %32, %41 : vector<16x32xf32>
    %c0_28 = arith.constant 0 : index
    %c0_29 = arith.constant 0 : index
    %43 = vector.load %arg10[%c0_28, %c0_29] : memref<1x32xf32, #tpu.memory_space<vmem>>, vector<1x32xf32>
    %44 = vector.broadcast %43 : vector<1x32xf32> to vector<16x32xf32>
    %45 = arith.mulf %42, %44 : vector<16x32xf32>
    %c0_30 = arith.constant 0 : index
    %c0_31 = arith.constant 0 : index
    %46 = vector.load %arg11[%c0_30, %c0_31] : memref<1x32xf32, #tpu.memory_space<vmem>>, vector<1x32xf32>
    %47 = vector.broadcast %46 : vector<1x32xf32> to vector<16x32xf32>
    %48 = arith.addf %45, %47 : vector<16x32xf32>
    %c0_32 = arith.constant 0 : index
    %c0_33 = arith.constant 0 : index
    %49 = vector.load %arg15[%c0_32, %c0_33] : memref<16x32xf32, #tpu.memory_space<vmem>>, vector<16x32xf32>
    tpu.vector_store %arg15[%c0_32, %c0_33], %48 {strides = array<i32>} : memref<16x32xf32, #tpu.memory_space<vmem>>, vector<16x32xf32>,
    %c0_34 = arith.constant 0 : index
    %c0_35 = arith.constant 0 : index
    %50 = vector.load %arg12[%c0_34, %c0_35] : memref<32x32xf32, #tpu.memory_space<vmem>>, vector<32x32xf32>
    %cst_36 = arith.constant dense<0.000000e+00> : vector<16x32xf32>
    %51 = tpu.matmul %48, %50, %cst_36 {dimension_numbers = #tpu.dot_dimension_numbers<[1], [0], [0], [1], [0, 0, 1, 1], [], []>} : vector<16x32xf32>, vector<32x32xf32>, vector<16x32xf32> -> vector<16x32xf32>
    %c0_37 = arith.constant 0 : index
    %c0_38 = arith.constant 0 : index
    %52 = vector.load %arg13[%c0_37, %c0_38] : memref<1x32xf32, #tpu.memory_space<vmem>>, vector<1x32xf32>
    %53 = vector.broadcast %52 : vector<1x32xf32> to vector<16x32xf32>
    %54 = arith.addf %51, %53 : vector<16x32xf32>
    %cst_39 = arith.constant 0.000000e+00 : f32
    %55 = vector.broadcast %cst_39 : f32 to vector<16x32xf32>
    %56 = arith.subf %55, %54 : vector<16x32xf32>
    %57 = math.exp %56 : vector<16x32xf32>
    %cst_40 = arith.constant 1.000000e+00 : f32
    %58 = vector.broadcast %cst_40 : f32 to vector<16x32xf32>
    %59 = arith.addf %58, %57 : vector<16x32xf32>
    %cst_41 = arith.constant 1.000000e+00 : f32
    %60 = vector.broadcast %cst_41 : f32 to vector<16x32xf32>
    %61 = arith.divf %60, %59 : vector<16x32xf32>
    %62 = arith.mulf %54, %61 : vector<16x32xf32>
    %c0_42 = arith.constant 0 : index
    %c0_43 = arith.constant 0 : index
    %63 = vector.load %arg14[%c0_42, %c0_43] : memref<1x32xf32, #tpu.memory_space<vmem>>, vector<1x32xf32>
    %64 = vector.broadcast %63 : vector<1x32xf32> to vector<16x32xf32>
    %65 = arith.mulf %62, %64 : vector<16x32xf32>
    %cst_44 = arith.constant dense<0.000000e+00> : vector<16xf32>
    %66 = vector.multi_reduction <add>, %65, %cst_44 [1] : vector<16x32xf32> to vector<16xf32>
    %67 = vector.shape_cast %66 : vector<16xf32> to vector<16x1xf32>
    %c0_45 = arith.constant 0 : index
    %c0_46 = arith.constant 0 : index
    %68 = vector.load %arg16[%c0_45, %c0_46] : memref<16x1xf32, #tpu.memory_space<vmem>>, vector<16x1xf32>
    tpu.vector_store %arg16[%c0_45, %c0_46], %67 {strides = array<i32>} : memref<16x1xf32, #tpu.memory_space<vmem>>, vector<16x1xf32>,
    return
  }
  func.func @transform_0(%arg0: i32) -> (i32, i32) {
    %c0_i32 = arith.constant 0 : i32
    %c0_i32_0 = arith.constant 0 : i32
    return %arg0, %c0_i32 : i32, i32
  }
  func.func @transform_1(%arg0: i32) -> (i32, i32) {
    %c0_i32 = arith.constant 0 : i32
    %c0_i32_0 = arith.constant 0 : i32
    return %arg0, %c0_i32 : i32, i32
  }
  func.func @transform_2(%arg0: i32) -> (i32, i32) {
    %c0_i32 = arith.constant 0 : i32
    %c0_i32_0 = arith.constant 0 : i32
    return %arg0, %c0_i32 : i32, i32
  }
  func.func @transform_3(%arg0: i32) -> (i32, i32) {
    %c0_i32 = arith.constant 0 : i32
    %c0_i32_0 = arith.constant 0 : i32
    %c0_i32_1 = arith.constant 0 : i32
    return %c0_i32, %c0_i32_0 : i32, i32
  }
  func.func @transform_4(%arg0: i32) -> (i32, i32) {
    %c0_i32 = arith.constant 0 : i32
    %c0_i32_0 = arith.constant 0 : i32
    %c0_i32_1 = arith.constant 0 : i32
    return %c0_i32, %c0_i32_0 : i32, i32
  }
  func.func @transform_5(%arg0: i32) -> (i32, i32) {
    %c0_i32 = arith.constant 0 : i32
    %c0_i32_0 = arith.constant 0 : i32
    %c0_i32_1 = arith.constant 0 : i32
    return %c0_i32, %c0_i32_0 : i32, i32
  }
  func.func @transform_6(%arg0: i32) -> (i32, i32) {
    %c0_i32 = arith.constant 0 : i32
    %c0_i32_0 = arith.constant 0 : i32
    %c0_i32_1 = arith.constant 0 : i32
    return %c0_i32, %c0_i32_0 : i32, i32
  }
  func.func @transform_7(%arg0: i32) -> (i32, i32) {
    %c0_i32 = arith.constant 0 : i32
    %c0_i32_0 = arith.constant 0 : i32
    %c0_i32_1 = arith.constant 0 : i32
    return %c0_i32, %c0_i32_0 : i32, i32
  }
  func.func @transform_8(%arg0: i32) -> (i32, i32) {
    %c0_i32 = arith.constant 0 : i32
    %c0_i32_0 = arith.constant 0 : i32
    %c0_i32_1 = arith.constant 0 : i32
    return %c0_i32, %c0_i32_0 : i32, i32
  }
  func.func @transform_9(%arg0: i32) -> (i32, i32) {
    %c0_i32 = arith.constant 0 : i32
    %c0_i32_0 = arith.constant 0 : i32
    %c0_i32_1 = arith.constant 0 : i32
    return %c0_i32, %c0_i32_0 : i32, i32
  }
  func.func @transform_10(%arg0: i32) -> (i32, i32) {
    %c0_i32 = arith.constant 0 : i32
    %c0_i32_0 = arith.constant 0 : i32
    %c0_i32_1 = arith.constant 0 : i32
    return %c0_i32, %c0_i32_0 : i32, i32
  }
  func.func @transform_11(%arg0: i32) -> (i32, i32) {
    %c0_i32 = arith.constant 0 : i32
    %c0_i32_0 = arith.constant 0 : i32
    %c0_i32_1 = arith.constant 0 : i32
    return %c0_i32, %c0_i32_0 : i32, i32
  }
  func.func @transform_12(%arg0: i32) -> (i32, i32) {
    %c0_i32 = arith.constant 0 : i32
    %c0_i32_0 = arith.constant 0 : i32
    %c0_i32_1 = arith.constant 0 : i32
    return %c0_i32, %c0_i32_0 : i32, i32
  }
  func.func @transform_13(%arg0: i32) -> (i32, i32) {
    %c0_i32 = arith.constant 0 : i32
    %c0_i32_0 = arith.constant 0 : i32
    %c0_i32_1 = arith.constant 0 : i32
    return %c0_i32, %c0_i32_0 : i32, i32
  }
  func.func @transform_14(%arg0: i32) -> (i32, i32) {
    %c0_i32 = arith.constant 0 : i32
    %c0_i32_0 = arith.constant 0 : i32
    return %arg0, %c0_i32 : i32, i32
  }
  func.func @transform_15(%arg0: i32) -> (i32, i32) {
    %c0_i32 = arith.constant 0 : i32
    %c0_i32_0 = arith.constant 0 : i32
    return %arg0, %c0_i32 : i32, i32
  }
}

module attributes {stable_mosaic.version = 11 : i64} {
  func.func @_node_kernel(%arg0: i32, %arg1: memref<8x32xf32, #tpu.memory_space<vmem>>, %arg2: memref<8x32xf32, #tpu.memory_space<vmem>>, %arg3: memref<32x32xf32, #tpu.memory_space<vmem>>, %arg4: memref<32x32xf32, #tpu.memory_space<vmem>>, %arg5: memref<1x32xf32, #tpu.memory_space<vmem>>, %arg6: memref<32x32xf32, #tpu.memory_space<vmem>>, %arg7: memref<1x32xf32, #tpu.memory_space<vmem>>, %arg8: memref<8x32xf32, #tpu.memory_space<vmem>>) attributes {dimension_semantics = [#tpu.dimension_semantics<parallel>], iteration_bounds = array<i64: 1>, scalar_prefetch = 0 : i64, scratch_operands = 0 : i64, tpu.core_type = #tpu.core_type<tc>, window_params = [{transform_indices = @transform_0, window_bounds = array<i64: 8, 32>}, {transform_indices = @transform_1, window_bounds = array<i64: 8, 32>}, {pipeline_mode = #tpu.pipeline_mode<synchronous>, transform_indices = @transform_2, window_bounds = array<i64: 32, 32>}, {pipeline_mode = #tpu.pipeline_mode<synchronous>, transform_indices = @transform_3, window_bounds = array<i64: 32, 32>}, {pipeline_mode = #tpu.pipeline_mode<synchronous>, transform_indices = @transform_4, window_bounds = array<i64: 1, 32>}, {pipeline_mode = #tpu.pipeline_mode<synchronous>, transform_indices = @transform_5, window_bounds = array<i64: 32, 32>}, {pipeline_mode = #tpu.pipeline_mode<synchronous>, transform_indices = @transform_6, window_bounds = array<i64: 1, 32>}, {transform_indices = @transform_7, window_bounds = array<i64: 8, 32>}]} {
    %c0 = arith.constant 0 : index
    %c0_0 = arith.constant 0 : index
    %0 = vector.load %arg1[%c0, %c0_0] : memref<8x32xf32, #tpu.memory_space<vmem>>, vector<8x32xf32>
    %c0_1 = arith.constant 0 : index
    %c0_2 = arith.constant 0 : index
    %1 = vector.load %arg3[%c0_1, %c0_2] : memref<32x32xf32, #tpu.memory_space<vmem>>, vector<32x32xf32>
    %cst = arith.constant dense<0.000000e+00> : vector<8x32xf32>
    %2 = tpu.matmul %0, %1, %cst {dimension_numbers = #tpu.dot_dimension_numbers<[1], [0], [0], [1], [0, 0, 1, 1], [], []>} : vector<8x32xf32>, vector<32x32xf32>, vector<8x32xf32> -> vector<8x32xf32>
    %c0_3 = arith.constant 0 : index
    %c0_4 = arith.constant 0 : index
    %3 = vector.load %arg2[%c0_3, %c0_4] : memref<8x32xf32, #tpu.memory_space<vmem>>, vector<8x32xf32>
    %c0_5 = arith.constant 0 : index
    %c0_6 = arith.constant 0 : index
    %4 = vector.load %arg4[%c0_5, %c0_6] : memref<32x32xf32, #tpu.memory_space<vmem>>, vector<32x32xf32>
    %cst_7 = arith.constant dense<0.000000e+00> : vector<8x32xf32>
    %5 = tpu.matmul %3, %4, %cst_7 {dimension_numbers = #tpu.dot_dimension_numbers<[1], [0], [0], [1], [0, 0, 1, 1], [], []>} : vector<8x32xf32>, vector<32x32xf32>, vector<8x32xf32> -> vector<8x32xf32>
    %6 = arith.addf %2, %5 : vector<8x32xf32>
    %c0_8 = arith.constant 0 : index
    %c0_9 = arith.constant 0 : index
    %7 = vector.load %arg5[%c0_8, %c0_9] : memref<1x32xf32, #tpu.memory_space<vmem>>, vector<1x32xf32>
    %8 = vector.broadcast %7 : vector<1x32xf32> to vector<8x32xf32>
    %9 = arith.addf %6, %8 : vector<8x32xf32>
    %cst_10 = arith.constant 0.000000e+00 : f32
    %10 = vector.broadcast %cst_10 : f32 to vector<8x32xf32>
    %11 = arith.subf %10, %9 : vector<8x32xf32>
    %12 = math.exp %11 : vector<8x32xf32>
    %cst_11 = arith.constant 1.000000e+00 : f32
    %13 = vector.broadcast %cst_11 : f32 to vector<8x32xf32>
    %14 = arith.addf %13, %12 : vector<8x32xf32>
    %cst_12 = arith.constant 1.000000e+00 : f32
    %15 = vector.broadcast %cst_12 : f32 to vector<8x32xf32>
    %16 = arith.divf %15, %14 : vector<8x32xf32>
    %17 = arith.mulf %9, %16 : vector<8x32xf32>
    %c0_13 = arith.constant 0 : index
    %c0_14 = arith.constant 0 : index
    %18 = vector.load %arg6[%c0_13, %c0_14] : memref<32x32xf32, #tpu.memory_space<vmem>>, vector<32x32xf32>
    %cst_15 = arith.constant dense<0.000000e+00> : vector<8x32xf32>
    %19 = tpu.matmul %17, %18, %cst_15 {dimension_numbers = #tpu.dot_dimension_numbers<[1], [0], [0], [1], [0, 0, 1, 1], [], []>} : vector<8x32xf32>, vector<32x32xf32>, vector<8x32xf32> -> vector<8x32xf32>
    %c0_16 = arith.constant 0 : index
    %c0_17 = arith.constant 0 : index
    %20 = vector.load %arg7[%c0_16, %c0_17] : memref<1x32xf32, #tpu.memory_space<vmem>>, vector<1x32xf32>
    %21 = vector.broadcast %20 : vector<1x32xf32> to vector<8x32xf32>
    %22 = arith.addf %19, %21 : vector<8x32xf32>
    %23 = arith.addf %0, %22 : vector<8x32xf32>
    %c0_18 = arith.constant 0 : index
    %c0_19 = arith.constant 0 : index
    %24 = vector.load %arg8[%c0_18, %c0_19] : memref<8x32xf32, #tpu.memory_space<vmem>>, vector<8x32xf32>
    tpu.vector_store %arg8[%c0_18, %c0_19], %23 {strides = array<i32>} : memref<8x32xf32, #tpu.memory_space<vmem>>, vector<8x32xf32>,
    return
  }
  func.func @transform_0(%arg0: i32) -> (i32, i32) {
    %c0_i32 = arith.constant 0 : i32
    %c0_i32_0 = arith.constant 0 : i32
    return %arg0, %c0_i32 : i32, i32
  }
  func.func @transform_1(%arg0: i32) -> (i32, i32) {
    %c0_i32 = arith.constant 0 : i32
    %c0_i32_0 = arith.constant 0 : i32
    return %arg0, %c0_i32 : i32, i32
  }
  func.func @transform_2(%arg0: i32) -> (i32, i32) {
    %c0_i32 = arith.constant 0 : i32
    %c0_i32_0 = arith.constant 0 : i32
    %c0_i32_1 = arith.constant 0 : i32
    return %c0_i32, %c0_i32_0 : i32, i32
  }
  func.func @transform_3(%arg0: i32) -> (i32, i32) {
    %c0_i32 = arith.constant 0 : i32
    %c0_i32_0 = arith.constant 0 : i32
    %c0_i32_1 = arith.constant 0 : i32
    return %c0_i32, %c0_i32_0 : i32, i32
  }
  func.func @transform_4(%arg0: i32) -> (i32, i32) {
    %c0_i32 = arith.constant 0 : i32
    %c0_i32_0 = arith.constant 0 : i32
    %c0_i32_1 = arith.constant 0 : i32
    return %c0_i32, %c0_i32_0 : i32, i32
  }
  func.func @transform_5(%arg0: i32) -> (i32, i32) {
    %c0_i32 = arith.constant 0 : i32
    %c0_i32_0 = arith.constant 0 : i32
    %c0_i32_1 = arith.constant 0 : i32
    return %c0_i32, %c0_i32_0 : i32, i32
  }
  func.func @transform_6(%arg0: i32) -> (i32, i32) {
    %c0_i32 = arith.constant 0 : i32
    %c0_i32_0 = arith.constant 0 : i32
    %c0_i32_1 = arith.constant 0 : i32
    return %c0_i32, %c0_i32_0 : i32, i32
  }
  func.func @transform_7(%arg0: i32) -> (i32, i32) {
    %c0_i32 = arith.constant 0 : i32
    %c0_i32_0 = arith.constant 0 : i32
    return %arg0, %c0_i32 : i32, i32
  }
}

module attributes {stable_mosaic.version = 11 : i64} {
  func.func @_linear_kernel(%arg0: i32, %arg1: memref<8x32xf32, #tpu.memory_space<vmem>>, %arg2: memref<32x5xf32, #tpu.memory_space<vmem>>, %arg3: memref<1x5xf32, #tpu.memory_space<vmem>>, %arg4: memref<8x5xf32, #tpu.memory_space<vmem>>) attributes {dimension_semantics = [#tpu.dimension_semantics<parallel>], iteration_bounds = array<i64: 1>, scalar_prefetch = 0 : i64, scratch_operands = 0 : i64, tpu.core_type = #tpu.core_type<tc>, window_params = [{transform_indices = @transform_0, window_bounds = array<i64: 8, 32>}, {pipeline_mode = #tpu.pipeline_mode<synchronous>, transform_indices = @transform_1, window_bounds = array<i64: 32, 5>}, {pipeline_mode = #tpu.pipeline_mode<synchronous>, transform_indices = @transform_2, window_bounds = array<i64: 1, 5>}, {transform_indices = @transform_3, window_bounds = array<i64: 8, 5>}]} {
    %c0 = arith.constant 0 : index
    %c0_0 = arith.constant 0 : index
    %0 = vector.load %arg1[%c0, %c0_0] : memref<8x32xf32, #tpu.memory_space<vmem>>, vector<8x32xf32>
    %c0_1 = arith.constant 0 : index
    %c0_2 = arith.constant 0 : index
    %1 = vector.load %arg2[%c0_1, %c0_2] : memref<32x5xf32, #tpu.memory_space<vmem>>, vector<32x5xf32>
    %cst = arith.constant dense<0.000000e+00> : vector<8x5xf32>
    %2 = tpu.matmul %0, %1, %cst {dimension_numbers = #tpu.dot_dimension_numbers<[1], [0], [0], [1], [0, 0, 1, 1], [], []>} : vector<8x32xf32>, vector<32x5xf32>, vector<8x5xf32> -> vector<8x5xf32>
    %c0_3 = arith.constant 0 : index
    %c0_4 = arith.constant 0 : index
    %3 = vector.load %arg3[%c0_3, %c0_4] : memref<1x5xf32, #tpu.memory_space<vmem>>, vector<1x5xf32>
    %4 = vector.broadcast %3 : vector<1x5xf32> to vector<8x5xf32>
    %5 = arith.addf %2, %4 : vector<8x5xf32>
    %c0_5 = arith.constant 0 : index
    %c0_6 = arith.constant 0 : index
    %6 = vector.load %arg4[%c0_5, %c0_6] : memref<8x5xf32, #tpu.memory_space<vmem>>, vector<8x5xf32>
    tpu.vector_store %arg4[%c0_5, %c0_6], %5 {strides = array<i32>} : memref<8x5xf32, #tpu.memory_space<vmem>>, vector<8x5xf32>,
    return
  }
  func.func @transform_0(%arg0: i32) -> (i32, i32) {
    %c0_i32 = arith.constant 0 : i32
    %c0_i32_0 = arith.constant 0 : i32
    return %arg0, %c0_i32 : i32, i32
  }
  func.func @transform_1(%arg0: i32) -> (i32, i32) {
    %c0_i32 = arith.constant 0 : i32
    %c0_i32_0 = arith.constant 0 : i32
    %c0_i32_1 = arith.constant 0 : i32
    return %c0_i32, %c0_i32_0 : i32, i32
  }
  func.func @transform_2(%arg0: i32) -> (i32, i32) {
    %c0_i32 = arith.constant 0 : i32
    %c0_i32_0 = arith.constant 0 : i32
    %c0_i32_1 = arith.constant 0 : i32
    return %c0_i32, %c0_i32_0 : i32, i32
  }
  func.func @transform_3(%arg0: i32) -> (i32, i32) {
    %c0_i32 = arith.constant 0 : i32
    %c0_i32_0 = arith.constant 0 : i32
    return %arg0, %c0_i32 : i32, i32
  }
}

</mosaic_0001>

<llo_original>
// kernel: egnn_forward.8
$region0: #{egnn_forward.8}
  #allocation0 [shape = 'u32[]', space=smem, size = 0x4, offset = 0x4, fixed_abs, tag = 'smem constant byte address 0x4 - core index']
  #allocation1 [shape = 'u32[144,128]{1,0:T(1,128)}', space=vmem, size = 0x12000, scoped, tag = 'internal scratch']
  %s0 = inlined_call_operand.vmem [shape: f32[8,6], index: 0, kind: input, shape index: {}]
  %s1 = inlined_call_operand.vmem [shape: f32[6,32], index: 1, kind: input, shape index: {}]
  %s2 = inlined_call_operand.vmem [shape: f32[1,32], index: 2, kind: input, shape index: {}]
  %s3 = inlined_call_operand.vmem [shape: f32[8,32], index: 3, kind: output, shape index: {}]
  %s4 = sld [smem:[#allocation0]]
  $region22: #{egnn_forward.8} parent=0
    _
  %s6 = ssub.s32 1, %s4
  %s7 = scalar_select 0, %s6, %s4
  // Predicated region
  $region2: #{egnn_forward.8} parent=0 // pred_check
    _
  $region3: #{egnn_forward.8} parent=0 // pred_check_branch
    %9 = sbr.rel (0) target = $region5
  $region4: #{egnn_forward.8} parent=0 // pred_region
    _
  $region5: #{egnn_forward.8} parent=0 // pred_fallthru
    _
  // Predicated region
  $region6: #{egnn_forward.8} parent=0 // pred_check
    _
  $region7: #{egnn_forward.8} parent=0 // pred_check_branch
    %11 = sbr.rel (0) target = $region9
  $region8: #{egnn_forward.8} parent=0 // pred_region
    _
  $region9: #{egnn_forward.8} parent=0 // pred_fallthru
    _
  // Predicated region
  $region10: #{egnn_forward.8} parent=0 // pred_check
    _
  $region11: #{egnn_forward.8} parent=0 // pred_check_branch
    %13 = sbr.rel (0) target = $region13
  $region12: #{egnn_forward.8} parent=0 // pred_region
    _
  $region13: #{egnn_forward.8} parent=0 // pred_fallthru
    _
  %v14 = vld [vmem:[%s0] sm:$0xff]
  %v15 = vld [vmem:[%s1] sm:$0x3f]
  %v16 = vld [vmem:[%s2] sm:$0x1]
  %v18 = vlaneseq
  %v19 = vshrl.u32 %v18, 7
  %v20 = vsub.s32 0, %v19
  %v21 = vrot.slane %v16, %v20
  %vm23 = vcmask 48128
  %v25 = vsel %vm23, %v14, 0
  %vm27 = vcmask 1045504
  %v29 = vsel %vm27, %v15, 0
  %31 = vmatprep.subr.mxu0 0.0
  %32 = vmatpush1.msra.mxu0 %v29
  %33 = vmatprep.subr.mxu0 0.0
  %34 = vmatpush1.msra.mxu0 0.0
  %35 = vmatprep.subr.mxu0 0.0
  %36 = vmatpush1.msra.mxu0 0.0
  %37 = vmatprep.subr.mxu0 0.0
  %38 = vmatpush1.msra.mxu0 0.0
  %39 = vmatprep.subr.mxu0 0.0
  %40 = vmatpush1.msra.mxu0 0.0
  %41 = vmatprep.subr.mxu0 0.0
  %42 = vmatpush1.msra.mxu0 0.0
  %43 = vmatprep.subr.mxu0 0.0
  %44 = vmatpush1.msra.mxu0 0.0
  %45 = vmatprep.subr.mxu0 0.0
  %46 = vmatpush1.msra.mxu0 0.0
  %47 = vmatprep.subr.mxu0 0.0
  %48 = vmatpush1.msra.mxu0 0.0
  %49 = vmatprep.subr.mxu0 0.0
  %50 = vmatpush1.msra.mxu0 0.0
  %51 = vmatprep.subr.mxu0 0.0
  %52 = vmatpush1.msra.mxu0 0.0
  %53 = vmatprep.subr.mxu0 0.0
  %54 = vmatpush1.msra.mxu0 0.0
  %55 = vmatprep.subr.mxu0 0.0
  %56 = vmatpush1.msra.mxu0 0.0
  %57 = vmatprep.subr.mxu0 0.0
  %58 = vmatpush1.msra.mxu0 0.0
  %59 = vmatprep.subr.mxu0 0.0
  %60 = vmatpush1.msra.mxu0 0.0
  %61 = vmatprep.subr.mxu0 0.0
  %62 = vmatpush1.msra.mxu0 0.0
  %63 = vmatprep.subr.mxu0 0.0
  %64 = vmatpush1.msra.mxu0 0.0
  %65 = vmatprep.subr.mxu0 0.0
  %66 = vmatpush1.msra.mxu0 0.0
  %67 = vmatprep.subr.mxu0 0.0
  %68 = vmatpush1.msra.mxu0 0.0
  %69 = vmatprep.subr.mxu0 0.0
  %70 = vmatpush1.msra.mxu0 0.0
  %71 = vmatprep.subr.mxu0 0.0
  %72 = vmatpush1.msra.mxu0 0.0
  %73 = vmatprep.subr.mxu0 0.0
  %74 = vmatpush1.msra.mxu0 0.0
  %75 = vmatprep.subr.mxu0 0.0
  %76 = vmatpush1.msra.mxu0 0.0
  %77 = vmatprep.subr.mxu0 0.0
  %78 = vmatpush1.msra.mxu0 0.0
  %79 = vmatprep.subr.mxu0 0.0
  %80 = vmatpush1.msra.mxu0 0.0
  %81 = vmatprep.subr.mxu0 0.0
  %82 = vmatpush1.msra.mxu0 0.0
  %83 = vmatprep.subr.mxu0 0.0
  %84 = vmatpush1.msra.mxu0 0.0
  %85 = vmatprep.subr.mxu0 0.0
  %86 = vmatpush1.msra.mxu0 0.0
  %87 = vmatprep.subr.mxu0 0.0
  %88 = vmatpush1.msra.mxu0 0.0
  %89 = vmatprep.subr.mxu0 0.0
  %90 = vmatpush1.msra.mxu0 0.0
  %91 = vmatprep.subr.mxu0 0.0
  %92 = vmatpush1.msra.mxu0 0.0
  %93 = vmatprep.subr.mxu0 0.0
  %94 = vmatpush1.msra.mxu0 0.0
  %95 = vmatprep.mubr.f32.mxu0 0.0
  %96 = vmatmul.mubr.f32.gmra.mrb[0].mxu0 %v25
  %v97 = vpop.f32.mrb[0].mxu0
  %v98 = vadd.f32 %v21, %v97
  %v99 = vpop.f32.mrb[0].mxu0
  %100 = vdwg.mxu0
  %vm101 = vcmask 261120
  %102 = vst.msk [vmem:[%s3] sm:$0xff] %vm101, %v98
  // Predicated region
  $region14: #{egnn_forward.8} parent=0 // pred_check
    _
  $region15: #{egnn_forward.8} parent=0 // pred_check_branch
    %104 = sbr.rel (0) target = $region17
  $region16: #{egnn_forward.8} parent=0 // pred_region
    _
  $region17: #{egnn_forward.8} parent=0 // pred_fallthru
    _
  // Predicated region
  $region18: #{egnn_forward.8} parent=0 // pred_check
    _
  $region19: #{egnn_forward.8} parent=0 // pred_check_branch
    %106 = sbr.rel (0) target = $region21
  $region20: #{egnn_forward.8} parent=0 // pred_region
    _
  $region21: #{egnn_forward.8} parent=0 // pred_fallthru
    _

// kernel: egnn_forward.9
$region0: #{egnn_forward.9}
  #allocation0 [shape = 'u32[]', space=smem, size = 0x4, offset = 0x4, fixed_abs, tag = 'smem constant byte address 0x4 - core index']
  #allocation1 [shape = 'u32[144,128]{1,0:T(1,128)}', space=vmem, size = 0x12000, scoped, tag = 'internal scratch']
  %s0 = inlined_call_operand.vmem [shape: f32[16,32], index: 0, kind: input, shape index: {}]
  %s1 = inlined_call_operand.vmem [shape: f32[16,32], index: 1, kind: input, shape index: {}]
  %s2 = inlined_call_operand.vmem [shape: f32[16,16], index: 2, kind: input, shape index: {}]
  %s3 = inlined_call_operand.vmem [shape: f32[32,32], index: 3, kind: input, shape index: {}]
  %s4 = inlined_call_operand.vmem [shape: f32[32,32], index: 4, kind: input, shape index: {}]
  %s5 = inlined_call_operand.vmem [shape: f32[16,32], index: 5, kind: input, shape index: {}]
  %s6 = inlined_call_operand.vmem [shape: f32[1,32], index: 6, kind: input, shape index: {}]
  %s7 = inlined_call_operand.vmem [shape: f32[32,32], index: 7, kind: input, shape index: {}]
  %s8 = inlined_call_operand.vmem [shape: f32[1,32], index: 8, kind: input, shape index: {}]
  %s9 = inlined_call_operand.vmem [shape: f32[1,32], index: 9, kind: input, shape index: {}]
  %s10 = inlined_call_operand.vmem [shape: f32[1,32], index: 10, kind: input, shape index: {}]
  %s11 = inlined_call_operand.vmem [shape: f32[32,32], index: 11, kind: input, shape index: {}]
  %s12 = inlined_call_operand.vmem [shape: f32[1,32], index: 12, kind: input, shape index: {}]
  %s13 = inlined_call_operand.vmem [shape: f32[1,32], index: 13, kind: input, shape index: {}]
  %s14 = inlined_call_operand.vmem [shape: f32[16,32], index: 14, kind: output, shape index: {0}]
  %s15 = inlined_call_operand.vmem [shape: f32[16,1], index: 15, kind: output, shape index: {1}]
  %16 = xla_tuple %s14, %s15
  %s17 = sld [smem:[#allocation0]]
  $region74: #{egnn_forward.9} parent=0
    _
  %s19 = ssub.s32 1, %s17
  %s20 = scalar_select 0, %s19, %s17
  // Predicated region
  $region2: #{egnn_forward.9} parent=0 // pred_check
    _
  $region3: #{egnn_forward.9} parent=0 // pred_check_branch
    %22 = sbr.rel (0) target = $region5
  $region4: #{egnn_forward.9} parent=0 // pred_region
    _
  $region5: #{egnn_forward.9} parent=0 // pred_fallthru
    _
  // Predicated region
  $region6: #{egnn_forward.9} parent=0 // pred_check
    _
  $region7: #{egnn_forward.9} parent=0 // pred_check_branch
    %24 = sbr.rel (0) target = $region9
  $region8: #{egnn_forward.9} parent=0 // pred_region
    _
  $region9: #{egnn_forward.9} parent=0 // pred_fallthru
    _
  // Predicated region
  $region10: #{egnn_forward.9} parent=0 // pred_check
    _
  $region11: #{egnn_forward.9} parent=0 // pred_check_branch
    %26 = sbr.rel (0) target = $region13
  $region12: #{egnn_forward.9} parent=0 // pred_region
    _
  $region13: #{egnn_forward.9} parent=0 // pred_fallthru
    _
  // Predicated region
  $region14: #{egnn_forward.9} parent=0 // pred_check
    _
  $region15: #{egnn_forward.9} parent=0 // pred_check_branch
    %28 = sbr.rel (0) target = $region17
  $region16: #{egnn_forward.9} parent=0 // pred_region
    _
  $region17: #{egnn_forward.9} parent=0 // pred_fallthru
    _
  // Predicated region
  $region18: #{egnn_forward.9} parent=0 // pred_check
    _
  $region19: #{egnn_forward.9} parent=0 // pred_check_branch
    %30 = sbr.rel (0) target = $region21
  $region20: #{egnn_forward.9} parent=0 // pred_region
    _
  $region21: #{egnn_forward.9} parent=0 // pred_fallthru
    _
  // Predicated region
  $region22: #{egnn_forward.9} parent=0 // pred_check
    _
  $region23: #{egnn_forward.9} parent=0 // pred_check_branch
    %32 = sbr.rel (0) target = $region25
  $region24: #{egnn_forward.9} parent=0 // pred_region
    _
  $region25: #{egnn_forward.9} parent=0 // pred_fallthru
    _
  // Predicated region
  $region26: #{egnn_forward.9} parent=0 // pred_check
    _
  $region27: #{egnn_forward.9} parent=0 // pred_check_branch
    %34 = sbr.rel (0) target = $region29
  $region28: #{egnn_forward.9} parent=0 // pred_region
    _
  $region29: #{egnn_forward.9} parent=0 // pred_fallthru
    _
  // Predicated region
  $region30: #{egnn_forward.9} parent=0 // pred_check
    _
  $region31: #{egnn_forward.9} parent=0 // pred_check_branch
    %36 = sbr.rel (0) target = $region33
  $region32: #{egnn_forward.9} parent=0 // pred_region
    _
  $region33: #{egnn_forward.9} parent=0 // pred_fallthru
    _
  // Predicated region
  $region34: #{egnn_forward.9} parent=0 // pred_check
    _
  $region35: #{egnn_forward.9} parent=0 // pred_check_branch
    %38 = sbr.rel (0) target = $region37
  $region36: #{egnn_forward.9} parent=0 // pred_region
    _
  $region37: #{egnn_forward.9} parent=0 // pred_fallthru
    _
  // Predicated region
  $region38: #{egnn_forward.9} parent=0 // pred_check
    _
  $region39: #{egnn_forward.9} parent=0 // pred_check_branch
    %40 = sbr.rel (0) target = $region41
  $region40: #{egnn_forward.9} parent=0 // pred_region
    _
  $region41: #{egnn_forward.9} parent=0 // pred_fallthru
    _
  // Predicated region
  $region42: #{egnn_forward.9} parent=0 // pred_check
    _
  $region43: #{egnn_forward.9} parent=0 // pred_check_branch
    %42 = sbr.rel (0) target = $region45
  $region44: #{egnn_forward.9} parent=0 // pred_region
    _
  $region45: #{egnn_forward.9} parent=0 // pred_fallthru
    _
  // Predicated region
  $region46: #{egnn_forward.9} parent=0 // pred_check
    _
  $region47: #{egnn_forward.9} parent=0 // pred_check_branch
    %44 = sbr.rel (0) target = $region49
  $region48: #{egnn_forward.9} parent=0 // pred_region
    _
  $region49: #{egnn_forward.9} parent=0 // pred_fallthru
    _
  // Predicated region
  $region50: #{egnn_forward.9} parent=0 // pred_check
    _
  $region51: #{egnn_forward.9} parent=0 // pred_check_branch
    %46 = sbr.rel (0) target = $region53
  $region52: #{egnn_forward.9} parent=0 // pred_region
    _
  $region53: #{egnn_forward.9} parent=0 // pred_fallthru
    _
  // Predicated region
  $region54: #{egnn_forward.9} parent=0 // pred_check
    _
  $region55: #{egnn_forward.9} parent=0 // pred_check_branch
    %48 = sbr.rel (0) target = $region57
  $region56: #{egnn_forward.9} parent=0 // pred_region
    _
  $region57: #{egnn_forward.9} parent=0 // pred_fallthru
    _
  %v49 = vld [vmem:[%s0] sm:$0xff]
  %v50 = vld [vmem:[%s0 + $0x8] sm:$0xff]
  %v51 = vld [vmem:[%s3] sm:$0xff]
  %v52 = vld [vmem:[%s3 + $0x8] sm:$0xff]
  %v53 = vld [vmem:[%s3 + $0x10] sm:$0xff]
  %v54 = vld [vmem:[%s3 + $0x18] sm:$0xff]
  %v55 = vld [vmem:[%s1] sm:$0xff]
  %v56 = vld [vmem:[%s1 + $0x8] sm:$0xff]
  %v57 = vld [vmem:[%s4] sm:$0xff]
  %v58 = vld [vmem:[%s4 + $0x8] sm:$0xff]
  %v59 = vld [vmem:[%s4 + $0x10] sm:$0xff]
  %v60 = vld [vmem:[%s4 + $0x18] sm:$0xff]
  %vm61 = vcmask 261120
  %v63 = vsel %vm61, %v55, 0
  %v66 = vsel %vm61, %v56, 0
  %68 = vmatprep.subr.mxu0 0.0
  %69 = vmatpush1.msra.mxu0 %v57
  %70 = vmatprep.subr.mxu0 0.0
  %71 = vmatpush1.msra.mxu0 %v58
  %72 = vmatprep.subr.mxu0 0.0
  %73 = vmatpush1.msra.mxu0 %v59
  %74 = vmatprep.subr.mxu0 0.0
  %75 = vmatpush1.msra.mxu0 %v60
  %76 = vmatprep.subr.mxu0 0.0
  %77 = vmatpush1.msra.mxu0 0.0
  %78 = vmatprep.subr.mxu0 0.0
  %79 = vmatpush1.msra.mxu0 0.0
  %80 = vmatprep.subr.mxu0 0.0
  %81 = vmatpush1.msra.mxu0 0.0
  %82 = vmatprep.subr.mxu0 0.0
  %83 = vmatpush1.msra.mxu0 0.0
  %84 = vmatprep.subr.mxu0 0.0
  %85 = vmatpush1.msra.mxu0 0.0
  %86 = vmatprep.subr.mxu0 0.0
  %87 = vmatpush1.msra.mxu0 0.0
  %88 = vmatprep.subr.mxu0 0.0
  %89 = vmatpush1.msra.mxu0 0.0
  %90 = vmatprep.subr.mxu0 0.0
  %91 = vmatpush1.msra.mxu0 0.0
  %92 = vmatprep.subr.mxu0 0.0
  %93 = vmatpush1.msra.mxu0 0.0
  %94 = vmatprep.subr.mxu0 0.0
  %95 = vmatpush1.msra.mxu0 0.0
  %96 = vmatprep.subr.mxu0 0.0
  %97 = vmatpush1.msra.mxu0 0.0
  %98 = vmatprep.subr.mxu0 0.0
  %99 = vmatpush1.msra.mxu0 0.0
  %100 = vmatprep.subr.mxu0 0.0
  %101 = vmatpush1.msra.mxu0 0.0
  %102 = vmatprep.subr.mxu0 0.0
  %103 = vmatpush1.msra.mxu0 0.0
  %104 = vmatprep.subr.mxu0 0.0
  %105 = vmatpush1.msra.mxu0 0.0
  %106 = vmatprep.subr.mxu0 0.0
  %107 = vmatpush1.msra.mxu0 0.0
  %108 = vmatprep.subr.mxu0 0.0
  %109 = vmatpush1.msra.mxu0 0.0
  %110 = vmatprep.subr.mxu0 0.0
  %111 = vmatpush1.msra.mxu0 0.0
  %112 = vmatprep.subr.mxu0 0.0
  %113 = vmatpush1.msra.mxu0 0.0
  %114 = vmatprep.subr.mxu0 0.0
  %115 = vmatpush1.msra.mxu0 0.0
  %116 = vmatprep.subr.mxu0 0.0
  %117 = vmatpush1.msra.mxu0 0.0
  %118 = vmatprep.subr.mxu0 0.0
  %119 = vmatpush1.msra.mxu0 0.0
  %120 = vmatprep.subr.mxu0 0.0
  %121 = vmatpush1.msra.mxu0 0.0
  %122 = vmatprep.subr.mxu0 0.0
  %123 = vmatpush1.msra.mxu0 0.0
  %124 = vmatprep.subr.mxu0 0.0
  %125 = vmatpush1.msra.mxu0 0.0
  %126 = vmatprep.subr.mxu0 0.0
  %127 = vmatpush1.msra.mxu0 0.0
  %128 = vmatprep.subr.mxu0 0.0
  %129 = vmatpush1.msra.mxu0 0.0
  %130 = vmatprep.subr.mxu0 0.0
  %131 = vmatpush1.msra.mxu0 0.0
  %132 = vmatprep.mubr.f32.mxu0 0.0
  %133 = vmatmul.mubr.f32.gmra.mrb[0].mxu0 %v63
  %v134 = vpop.f32.mrb[0].mxu0
  %v135 = vadd.f32 0.0, %v134
  %v136 = vpop.f32.mrb[0].mxu0
  %137 = vmatprep.mubr.f32.mxu0 0.0
  %138 = vmatmul.mubr.f32.gmra.mrb[0].mxu0 %v66
  %v139 = vpop.f32.mrb[0].mxu0
  %v140 = vadd.f32 0.0, %v139
  %v141 = vpop.f32.mrb[0].mxu0
  %142 = vdwg.mxu0
  %v144 = vsel %vm61, %v49, 0
  %v147 = vsel %vm61, %v50, 0
  %149 = vmatprep.subr.mxu0 0.0
  %150 = vmatpush1.msra.mxu0 %v51
  %151 = vmatprep.subr.mxu0 0.0
  %152 = vmatpush1.msra.mxu0 %v52
  %153 = vmatprep.subr.mxu0 0.0
  %154 = vmatpush1.msra.mxu0 %v53
  %155 = vmatprep.subr.mxu0 0.0
  %156 = vmatpush1.msra.mxu0 %v54
  %157 = vmatprep.subr.mxu0 0.0
  %158 = vmatpush1.msra.mxu0 0.0
  %159 = vmatprep.subr.mxu0 0.0
  %160 = vmatpush1.msra.mxu0 0.0
  %161 = vmatprep.subr.mxu0 0.0
  %162 = vmatpush1.msra.mxu0 0.0
  %163 = vmatprep.subr.mxu0 0.0
  %164 = vmatpush1.msra.mxu0 0.0
  %165 = vmatprep.subr.mxu0 0.0
  %166 = vmatpush1.msra.mxu0 0.0
  %167 = vmatprep.subr.mxu0 0.0
  %168 = vmatpush1.msra.mxu0 0.0
  %169 = vmatprep.subr.mxu0 0.0
  %170 = vmatpush1.msra.mxu0 0.0
  %171 = vmatprep.subr.mxu0 0.0
  %172 = vmatpush1.msra.mxu0 0.0
  %173 = vmatprep.subr.mxu0 0.0
  %174 = vmatpush1.msra.mxu0 0.0
  %175 = vmatprep.subr.mxu0 0.0
  %176 = vmatpush1.msra.mxu0 0.0
  %177 = vmatprep.subr.mxu0 0.0
  %178 = vmatpush1.msra.mxu0 0.0
  %179 = vmatprep.subr.mxu0 0.0
  %180 = vmatpush1.msra.mxu0 0.0
  %181 = vmatprep.subr.mxu0 0.0
  %182 = vmatpush1.msra.mxu0 0.0
  %183 = vmatprep.subr.mxu0 0.0
  %184 = vmatpush1.msra.mxu0 0.0
  %185 = vmatprep.subr.mxu0 0.0
  %186 = vmatpush1.msra.mxu0 0.0
  %187 = vmatprep.subr.mxu0 0.0
  %188 = vmatpush1.msra.mxu0 0.0
  %189 = vmatprep.subr.mxu0 0.0
  %190 = vmatpush1.msra.mxu0 0.0
  %191 = vmatprep.subr.mxu0 0.0
  %192 = vmatpush1.msra.mxu0 0.0
  %193 = vmatprep.subr.mxu0 0.0
  %194 = vmatpush1.msra.mxu0 0.0
  %195 = vmatprep.subr.mxu0 0.0
  %196 = vmatpush1.msra.mxu0 0.0
  %197 = vmatprep.subr.mxu0 0.0
  %198 = vmatpush1.msra.mxu0 0.0
  %199 = vmatprep.subr.mxu0 0.0
  %200 = vmatpush1.msra.mxu0 0.0
  %201 = vmatprep.subr.mxu0 0.0
  %202 = vmatpush1.msra.mxu0 0.0
  %203 = vmatprep.subr.mxu0 0.0
  %204 = vmatpush1.msra.mxu0 0.0
  %205 = vmatprep.subr.mxu0 0.0
  %206 = vmatpush1.msra.mxu0 0.0
  %207 = vmatprep.subr.mxu0 0.0
  %208 = vmatpush1.msra.mxu0 0.0
  %209 = vmatprep.subr.mxu0 0.0
  %210 = vmatpush1.msra.mxu0 0.0
  %211 = vmatprep.subr.mxu0 0.0
  %212 = vmatpush1.msra.mxu0 0.0
  %213 = vmatprep.mubr.f32.mxu0 0.0
  %214 = vmatmul.mubr.f32.gmra.mrb[0].mxu0 %v144
  %v215 = vpop.f32.mrb[0].mxu0
  %v216 = vadd.f32 %v135, %v215
  %v217 = vpop.f32.mrb[0].mxu0
  %218 = vmatprep.mubr.f32.mxu0 0.0
  %219 = vmatmul.mubr.f32.gmra.mrb[0].mxu0 %v147
  %v220 = vpop.f32.mrb[0].mxu0
  %v221 = vadd.f32 %v140, %v220
  %v222 = vpop.f32.mrb[0].mxu0
  %223 = vdwg.mxu0
  %v224 = vld [vmem:[%s2] sm:$0xff]
  %v225 = vld [vmem:[%s2 + $0x8] sm:$0xff]
  %v226 = vld [vmem:[%s5] sm:$0xff]
  %v227 = vld [vmem:[%s5 + $0x8] sm:$0xff]
  %vm228 = vcmask 130048
  %v230 = vsel %vm228, %v224, 0
  %v233 = vsel %vm228, %v225, 0
  %235 = vmatprep.subr.mxu0 0.0
  %236 = vmatpush1.msra.mxu0 %v226
  %237 = vmatprep.subr.mxu0 0.0
  %238 = vmatpush1.msra.mxu0 %v227
  %239 = vmatprep.subr.mxu0 0.0
  %240 = vmatpush1.msra.mxu0 0.0
  %241 = vmatprep.subr.mxu0 0.0
  %242 = vmatpush1.msra.mxu0 0.0
  %243 = vmatprep.subr.mxu0 0.0
  %244 = vmatpush1.msra.mxu0 0.0
  %245 = vmatprep.subr.mxu0 0.0
  %246 = vmatpush1.msra.mxu0 0.0
  %247 = vmatprep.subr.mxu0 0.0
  %248 = vmatpush1.msra.mxu0 0.0
  %249 = vmatprep.subr.mxu0 0.0
  %250 = vmatpush1.msra.mxu0 0.0
  %251 = vmatprep.subr.mxu0 0.0
  %252 = vmatpush1.msra.mxu0 0.0
  %253 = vmatprep.subr.mxu0 0.0
  %254 = vmatpush1.msra.mxu0 0.0
  %255 = vmatprep.subr.mxu0 0.0
  %256 = vmatpush1.msra.mxu0 0.0
  %257 = vmatprep.subr.mxu0 0.0
  %258 = vmatpush1.msra.mxu0 0.0
  %259 = vmatprep.subr.mxu0 0.0
  %260 = vmatpush1.msra.mxu0 0.0
  %261 = vmatprep.subr.mxu0 0.0
  %262 = vmatpush1.msra.mxu0 0.0
  %263 = vmatprep.subr.mxu0 0.0
  %264 = vmatpush1.msra.mxu0 0.0
  %265 = vmatprep.subr.mxu0 0.0
  %266 = vmatpush1.msra.mxu0 0.0
  %267 = vmatprep.subr.mxu0 0.0
  %268 = vmatpush1.msra.mxu0 0.0
  %269 = vmatprep.subr.mxu0 0.0
  %270 = vmatpush1.msra.mxu0 0.0
  %271 = vmatprep.subr.mxu0 0.0
  %272 = vmatpush1.msra.mxu0 0.0
  %273 = vmatprep.subr.mxu0 0.0
  %274 = vmatpush1.msra.mxu0 0.0
  %275 = vmatprep.subr.mxu0 0.0
  %276 = vmatpush1.msra.mxu0 0.0
  %277 = vmatprep.subr.mxu0 0.0
  %278 = vmatpush1.msra.mxu0 0.0
  %279 = vmatprep.subr.mxu0 0.0
  %280 = vmatpush1.msra.mxu0 0.0
  %281 = vmatprep.subr.mxu0 0.0
  %282 = vmatpush1.msra.mxu0 0.0
  %283 = vmatprep.subr.mxu0 0.0
  %284 = vmatpush1.msra.mxu0 0.0
  %285 = vmatprep.subr.mxu0 0.0
  %286 = vmatpush1.msra.mxu0 0.0
  %287 = vmatprep.subr.mxu0 0.0
  %288 = vmatpush1.msra.mxu0 0.0
  %289 = vmatprep.subr.mxu0 0.0
  %290 = vmatpush1.msra.mxu0 0.0
  %291 = vmatprep.subr.mxu0 0.0
  %292 = vmatpush1.msra.mxu0 0.0
  %293 = vmatprep.subr.mxu0 0.0
  %294 = vmatpush1.msra.mxu0 0.0
  %295 = vmatprep.subr.mxu0 0.0
  %296 = vmatpush1.msra.mxu0 0.0
  %297 = vmatprep.subr.mxu0 0.0
  %298 = vmatpush1.msra.mxu0 0.0
  %299 = vmatprep.mubr.f32.mxu0 0.0
  %300 = vmatmul.mubr.f32.gmra.mrb[0].mxu0 %v230
  %v301 = vpop.f32.mrb[0].mxu0
  %v302 = vadd.f32 0.0, %v301
  %v303 = vpop.f32.mrb[0].mxu0
  %304 = vmatprep.mubr.f32.mxu0 0.0
  %305 = vmatmul.mubr.f32.gmra.mrb[0].mxu0 %v233
  %v306 = vpop.f32.mrb[0].mxu0
  %v307 = vadd.f32 0.0, %v306
  %v308 = vpop.f32.mrb[0].mxu0
  %309 = vdwg.mxu0
  %v310 = vadd.f32 %v216, %v302
  %v311 = vadd.f32 %v221, %v307
  %v312 = vld [vmem:[%s6] sm:$0x1]
  %v314 = vlaneseq
  %v315 = vshrl.u32 %v314, 7
  %v316 = vsub.s32 0, %v315
  %v317 = vrot.slane %v312, %v316
  %v319 = vadd.f32 %v310, %v317
  %v320 = vadd.f32 %v311, %v317
  %v321 = vsub.f32 0.0, %v319
  %v322 = vsub.f32 0.0, %v320
  %v323 = vmul.f32 %v321, 1.442695
  %v324 = vpow.pop %v323
  %v325 = vmul.f32 %v322, 1.442695
  %v326 = vpow.pop %v325
  %v327 = vadd.f32 %v324, 1.0
  %v328 = vadd.f32 %v326, 1.0
  %v329 = vrcp.pop %v327
  %v330 = vmul.f32 1.0, %v329
  %v331 = vrcp.pop %v328
  %v332 = vmul.f32 1.0, %v331
  %v333 = vmul.f32 %v319, %v330
  %v334 = vmul.f32 %v320, %v332
  %v335 = vld [vmem:[%s7] sm:$0xff]
  %v336 = vld [vmem:[%s7 + $0x8] sm:$0xff]
  %v337 = vld [vmem:[%s7 + $0x10] sm:$0xff]
  %v338 = vld [vmem:[%s7 + $0x18] sm:$0xff]
  %v339 = vld [vmem:[%s8] sm:$0x1]
  %v341 = vlaneseq
  %v342 = vshrl.u32 %v341, 7
  %v343 = vsub.s32 0, %v342
  %v344 = vrot.slane %v339, %v343
  %v347 = vsel %vm61, %v333, 0
  %v350 = vsel %vm61, %v334, 0
  %352 = vmatprep.subr.mxu0 0.0
  %353 = vmatpush1.msra.mxu0 %v335
  %354 = vmatprep.subr.mxu0 0.0
  %355 = vmatpush1.msra.mxu0 %v336
  %356 = vmatprep.subr.mxu0 0.0
  %357 = vmatpush1.msra.mxu0 %v337
  %358 = vmatprep.subr.mxu0 0.0
  %359 = vmatpush1.msra.mxu0 %v338
  %360 = vmatprep.subr.mxu0 0.0
  %361 = vmatpush1.msra.mxu0 0.0
  %362 = vmatprep.subr.mxu0 0.0
  %363 = vmatpush1.msra.mxu0 0.0
  %364 = vmatprep.subr.mxu0 0.0
  %365 = vmatpush1.msra.mxu0 0.0
  %366 = vmatprep.subr.mxu0 0.0
  %367 = vmatpush1.msra.mxu0 0.0
  %368 = vmatprep.subr.mxu0 0.0
  %369 = vmatpush1.msra.mxu0 0.0
  %370 = vmatprep.subr.mxu0 0.0
  %371 = vmatpush1.msra.mxu0 0.0
  %372 = vmatprep.subr.mxu0 0.0
  %373 = vmatpush1.msra.mxu0 0.0
  %374 = vmatprep.subr.mxu0 0.0
  %375 = vmatpush1.msra.mxu0 0.0
  %376 = vmatprep.subr.mxu0 0.0
  %377 = vmatpush1.msra.mxu0 0.0
  %378 = vmatprep.subr.mxu0 0.0
  %379 = vmatpush1.msra.mxu0 0.0
  %380 = vmatprep.subr.mxu0 0.0
  %381 = vmatpush1.msra.mxu0 0.0
  %382 = vmatprep.subr.mxu0 0.0
  %383 = vmatpush1.msra.mxu0 0.0
  %384 = vmatprep.subr.mxu0 0.0
  %385 = vmatpush1.msra.mxu0 0.0
  %386 = vmatprep.subr.mxu0 0.0
  %387 = vmatpush1.msra.mxu0 0.0
  %388 = vmatprep.subr.mxu0 0.0
  %389 = vmatpush1.msra.mxu0 0.0
  %390 = vmatprep.subr.mxu0 0.0
  %391 = vmatpush1.msra.mxu0 0.0
  %392 = vmatprep.subr.mxu0 0.0
  %393 = vmatpush1.msra.mxu0 0.0
  %394 = vmatprep.subr.mxu0 0.0
  %395 = vmatpush1.msra.mxu0 0.0
  %396 = vmatprep.subr.mxu0 0.0
  %397 = vmatpush1.msra.mxu0 0.0
  %398 = vmatprep.subr.mxu0 0.0
  %399 = vmatpush1.msra.mxu0 0.0
  %400 = vmatprep.subr.mxu0 0.0
  %401 = vmatpush1.msra.mxu0 0.0
  %402 = vmatprep.subr.mxu0 0.0
  %403 = vmatpush1.msra.mxu0 0.0
  %404 = vmatprep.subr.mxu0 0.0
  %405 = vmatpush1.msra.mxu0 0.0
  %406 = vmatprep.subr.mxu0 0.0
  %407 = vmatpush1.msra.mxu0 0.0
  %408 = vmatprep.subr.mxu0 0.0
  %409 = vmatpush1.msra.mxu0 0.0
  %410 = vmatprep.subr.mxu0 0.0
  %411 = vmatpush1.msra.mxu0 0.0
  %412 = vmatprep.subr.mxu0 0.0
  %413 = vmatpush1.msra.mxu0 0.0
  %414 = vmatprep.subr.mxu0 0.0
  %415 = vmatpush1.msra.mxu0 0.0
  %416 = vmatprep.mubr.f32.mxu0 0.0
  %417 = vmatmul.mubr.f32.gmra.mrb[0].mxu0 %v347
  %v418 = vpop.f32.mrb[0].mxu0
  %v419 = vadd.f32 %v344, %v418
  %v420 = vpop.f32.mrb[0].mxu0
  %421 = vmatprep.mubr.f32.mxu0 0.0
  %422 = vmatmul.mubr.f32.gmra.mrb[0].mxu0 %v350
  %v423 = vpop.f32.mrb[0].mxu0
  %v424 = vadd.f32 %v344, %v423
  %v425 = vpop.f32.mrb[0].mxu0
  %426 = vdwg.mxu0
  %v427 = vsel %vm61, %v419, 0.0
  %428 = vadd.xlane.f32.xlu0 %v427
  %v429 = vpop.xlane.xlu0 %428
  %v430 = vsel %vm61, %v424, 0.0
  %431 = vadd.xlane.f32.xlu0 %v430
  %v432 = vpop.xlane.xlu0 %431
  %v433 = vrcp.pop 32.0
  %v434 = vmul.f32 %v429, %v433
  %v435 = vmul.f32 %v432, %v433
  %v436 = vsub.f32 %v419, %v434
  %v437 = vsub.f32 %v424, %v435
  %v438 = vmul.f32 %v436, %v436
  %v439 = vmul.f32 %v437, %v437
  %v440 = vsel %vm61, %v438, 0.0
  %441 = vadd.xlane.f32.xlu0 %v440
  %v442 = vpop.xlane.xlu0 %441
  %v443 = vsel %vm61, %v439, 0.0
  %444 = vadd.xlane.f32.xlu0 %v443
  %v445 = vpop.xlane.xlu0 %444
  %v446 = vmul.f32 %v442, %v433
  %v447 = vmul.f32 %v445, %v433
  %v448 = vadd.f32 %v446, 1e-05
  %v449 = vadd.f32 %v447, 1e-05
  %v450 = vrsqrt.pop %v448
  %v451 = vrsqrt.pop %v449
  %v452 = vmul.f32 %v436, %v450
  %v453 = vmul.f32 %v437, %v451
  %v454 = vld [vmem:[%s9] sm:$0x1]
  %v456 = vlaneseq
  %v457 = vshrl.u32 %v456, 7
  %v458 = vsub.s32 0, %v457
  %v459 = vrot.slane %v454, %v458
  %v461 = vmul.f32 %v452, %v459
  %v462 = vmul.f32 %v453, %v459
  %v463 = vld [vmem:[%s10] sm:$0x1]
  %v465 = vlaneseq
  %v466 = vshrl.u32 %v465, 7
  %v467 = vsub.s32 0, %v466
  %v468 = vrot.slane %v463, %v467
  %v470 = vadd.f32 %v461, %v468
  %v471 = vadd.f32 %v462, %v468
  %472 = vst.msk [vmem:[%s14] sm:$0xff] %vm61, %v470
  %473 = vst.msk [vmem:[%s14 + $0x8] sm:$0xff] %vm61, %v471
  %v474 = vld [vmem:[%s11] sm:$0xff]
  %v475 = vld [vmem:[%s11 + $0x8] sm:$0xff]
  %v476 = vld [vmem:[%s11 + $0x10] sm:$0xff]
  %v477 = vld [vmem:[%s11 + $0x18] sm:$0xff]
  %v478 = vld [vmem:[%s12] sm:$0x1]
  %v480 = vlaneseq
  %v481 = vshrl.u32 %v480, 7
  %v482 = vsub.s32 0, %v481
  %v483 = vrot.slane %v478, %v482
  %v486 = vsel %vm61, %v470, 0
  %v489 = vsel %vm61, %v471, 0
  %491 = vmatprep.subr.mxu0 0.0
  %492 = vmatpush1.msra.mxu0 %v474
  %493 = vmatprep.subr.mxu0 0.0
  %494 = vmatpush1.msra.mxu0 %v475
  %495 = vmatprep.subr.mxu0 0.0
  %496 = vmatpush1.msra.mxu0 %v476
  %497 = vmatprep.subr.mxu0 0.0
  %498 = vmatpush1.msra.mxu0 %v477
  %499 = vmatprep.subr.mxu0 0.0
  %500 = vmatpush1.msra.mxu0 0.0
  %501 = vmatprep.subr.mxu0 0.0
  %502 = vmatpush1.msra.mxu0 0.0
  %503 = vmatprep.subr.mxu0 0.0
  %504 = vmatpush1.msra.mxu0 0.0
  %505 = vmatprep.subr.mxu0 0.0
  %506 = vmatpush1.msra.mxu0 0.0
  %507 = vmatprep.subr.mxu0 0.0
  %508 = vmatpush1.msra.mxu0 0.0
  %509 = vmatprep.subr.mxu0 0.0
  %510 = vmatpush1.msra.mxu0 0.0
  %511 = vmatprep.subr.mxu0 0.0
  %512 = vmatpush1.msra.mxu0 0.0
  %513 = vmatprep.subr.mxu0 0.0
  %514 = vmatpush1.msra.mxu0 0.0
  %515 = vmatprep.subr.mxu0 0.0
  %516 = vmatpush1.msra.mxu0 0.0
  %517 = vmatprep.subr.mxu0 0.0
  %518 = vmatpush1.msra.mxu0 0.0
  %519 = vmatprep.subr.mxu0 0.0
  %520 = vmatpush1.msra.mxu0 0.0
  %521 = vmatprep.subr.mxu0 0.0
  %522 = vmatpush1.msra.mxu0 0.0
  %523 = vmatprep.subr.mxu0 0.0
  %524 = vmatpush1.msra.mxu0 0.0
  %525 = vmatprep.subr.mxu0 0.0
  %526 = vmatpush1.msra.mxu0 0.0
  %527 = vmatprep.subr.mxu0 0.0
  %528 = vmatpush1.msra.mxu0 0.0
  %529 = vmatprep.subr.mxu0 0.0
  %530 = vmatpush1.msra.mxu0 0.0
  %531 = vmatprep.subr.mxu0 0.0
  %532 = vmatpush1.msra.mxu0 0.0
  %533 = vmatprep.subr.mxu0 0.0
  %534 = vmatpush1.msra.mxu0 0.0
  %535 = vmatprep.subr.mxu0 0.0
  %536 = vmatpush1.msra.mxu0 0.0
  %537 = vmatprep.subr.mxu0 0.0
  %538 = vmatpush1.msra.mxu0 0.0
  %539 = vmatprep.subr.mxu0 0.0
  %540 = vmatpush1.msra.mxu0 0.0
  %541 = vmatprep.subr.mxu0 0.0
  %542 = vmatpush1.msra.mxu0 0.0
  %543 = vmatprep.subr.mxu0 0.0
  %544 = vmatpush1.msra.mxu0 0.0
  %545 = vmatprep.subr.mxu0 0.0
  %546 = vmatpush1.msra.mxu0 0.0
  %547 = vmatprep.subr.mxu0 0.0
  %548 = vmatpush1.msra.mxu0 0.0
  %549 = vmatprep.subr.mxu0 0.0
  %550 = vmatpush1.msra.mxu0 0.0
  %551 = vmatprep.subr.mxu0 0.0
  %552 = vmatpush1.msra.mxu0 0.0
  %553 = vmatprep.subr.mxu0 0.0
  %554 = vmatpush1.msra.mxu0 0.0
  %555 = vmatprep.mubr.f32.mxu0 0.0
  %556 = vmatmul.mubr.f32.gmra.mrb[0].mxu0 %v486
  %v557 = vpop.f32.mrb[0].mxu0
  %v558 = vadd.f32 %v483, %v557
  %v559 = vpop.f32.mrb[0].mxu0
  %560 = vmatprep.mubr.f32.mxu0 0.0
  %561 = vmatmul.mubr.f32.gmra.mrb[0].mxu0 %v489
  %v562 = vpop.f32.mrb[0].mxu0
  %v563 = vadd.f32 %v483, %v562
  %v564 = vpop.f32.mrb[0].mxu0
  %565 = vdwg.mxu0
  %v566 = vsub.f32 0.0, %v558
  %v567 = vsub.f32 0.0, %v563
  %v568 = vmul.f32 %v566, 1.442695
  %v569 = vpow.pop %v568
  %v570 = vmul.f32 %v567, 1.442695
  %v571 = vpow.pop %v570
  %v572 = vadd.f32 %v569, 1.0
  %v573 = vadd.f32 %v571, 1.0
  %v574 = vrcp.pop %v572
  %v575 = vmul.f32 1.0, %v574
  %v576 = vrcp.pop %v573
  %v577 = vmul.f32 1.0, %v576
  %v578 = vmul.f32 %v558, %v575
  %v579 = vmul.f32 %v563, %v577
  %v580 = vld [vmem:[%s13] sm:$0x1]
  %v582 = vlaneseq
  %v583 = vshrl.u32 %v582, 7
  %v584 = vsub.s32 0, %v583
  %v585 = vrot.slane %v580, %v584
  %v587 = vmul.f32 %v578, %v585
  %v588 = vmul.f32 %v579, %v585
  %v589 = vsel %vm61, %v587, 0.0
  %590 = vadd.xlane.f32.xlu0 %v589
  %v591 = vpop.xlane.xlu0 %590
  %v592 = vsel %vm61, %v588, 0.0
  %593 = vadd.xlane.f32.xlu0 %v592
  %v594 = vpop.xlane.xlu0 %593
  %vm595 = vcmask 7168
  %596 = vst.msk [vmem:[%s15] sm:$0xff] %vm595, %v591
  %597 = vst.msk [vmem:[%s15 + $0x8] sm:$0xff] %vm595, %v594
  // Predicated region
  $region58: #{egnn_forward.9} parent=0 // pred_check
    _
  $region59: #{egnn_forward.9} parent=0 // pred_check_branch
    %599 = sbr.rel (0) target = $region61
  $region60: #{egnn_forward.9} parent=0 // pred_region
    _
  $region61: #{egnn_forward.9} parent=0 // pred_fallthru
    _
  // Predicated region
  $region62: #{egnn_forward.9} parent=0 // pred_check
    _
  $region63: #{egnn_forward.9} parent=0 // pred_check_branch
    %601 = sbr.rel (0) target = $region65
  $region64: #{egnn_forward.9} parent=0 // pred_region
    _
  $region65: #{egnn_forward.9} parent=0 // pred_fallthru
    _
  // Predicated region
  $region66: #{egnn_forward.9} parent=0 // pred_check
    _
  $region67: #{egnn_forward.9} parent=0 // pred_check_branch
    %603 = sbr.rel (0) target = $region69
  $region68: #{egnn_forward.9} parent=0 // pred_region
    _
  $region69: #{egnn_forward.9} parent=0 // pred_fallthru
    _
  // Predicated region
  $region70: #{egnn_forward.9} parent=0 // pred_check
    _
  $region71: #{egnn_forward.9} parent=0 // pred_check_branch
    %605 = sbr.rel (0) target = $region73
  $region72: #{egnn_forward.9} parent=0 // pred_region
    _
  $region73: #{egnn_forward.9} parent=0 // pred_fallthru
    _

// kernel: egnn_forward.10
$region0: #{egnn_forward.10}
  #allocation0 [shape = 'u32[]', space=smem, size = 0x4, offset = 0x4, fixed_abs, tag = 'smem constant byte address 0x4 - core index']
  #allocation1 [shape = 'u32[144,128]{1,0:T(1,128)}', space=vmem, size = 0x12000, scoped, tag = 'internal scratch']
  %s0 = inlined_call_operand.vmem [shape: f32[8,32], index: 0, kind: input, shape index: {}, may-alias: {0,7}]
  %s1 = inlined_call_operand.vmem [shape: f32[8,32], index: 1, kind: input, shape index: {}]
  %s2 = inlined_call_operand.vmem [shape: f32[32,32], index: 2, kind: input, shape index: {}]
  %s3 = inlined_call_operand.vmem [shape: f32[32,32], index: 3, kind: input, shape index: {}]
  %s4 = inlined_call_operand.vmem [shape: f32[1,32], index: 4, kind: input, shape index: {}]
  %s5 = inlined_call_operand.vmem [shape: f32[32,32], index: 5, kind: input, shape index: {}]
  %s6 = inlined_call_operand.vmem [shape: f32[1,32], index: 6, kind: input, shape index: {}]
  %s7 = inlined_call_operand.vmem [shape: f32[8,32], index: 7, kind: output, shape index: {}, may-alias: {0,7}]
  %s8 = sld [smem:[#allocation0]]
  $region38: #{egnn_forward.10} parent=0
    _
  %s10 = ssub.s32 1, %s8
  %s11 = scalar_select 0, %s10, %s8
  // Predicated region
  $region2: #{egnn_forward.10} parent=0 // pred_check
    _
  $region3: #{egnn_forward.10} parent=0 // pred_check_branch
    %13 = sbr.rel (0) target = $region5
  $region4: #{egnn_forward.10} parent=0 // pred_region
    _
  $region5: #{egnn_forward.10} parent=0 // pred_fallthru
    _
  // Predicated region
  $region6: #{egnn_forward.10} parent=0 // pred_check
    _
  $region7: #{egnn_forward.10} parent=0 // pred_check_branch
    %15 = sbr.rel (0) target = $region9
  $region8: #{egnn_forward.10} parent=0 // pred_region
    _
  $region9: #{egnn_forward.10} parent=0 // pred_fallthru
    _
  // Predicated region
  $region10: #{egnn_forward.10} parent=0 // pred_check
    _
  $region11: #{egnn_forward.10} parent=0 // pred_check_branch
    %17 = sbr.rel (0) target = $region13
  $region12: #{egnn_forward.10} parent=0 // pred_region
    _
  $region13: #{egnn_forward.10} parent=0 // pred_fallthru
    _
  // Predicated region
  $region14: #{egnn_forward.10} parent=0 // pred_check
    _
  $region15: #{egnn_forward.10} parent=0 // pred_check_branch
    %19 = sbr.rel (0) target = $region17
  $region16: #{egnn_forward.10} parent=0 // pred_region
    _
  $region17: #{egnn_forward.10} parent=0 // pred_fallthru
    _
  // Predicated region
  $region18: #{egnn_forward.10} parent=0 // pred_check
    _
  $region19: #{egnn_forward.10} parent=0 // pred_check_branch
    %21 = sbr.rel (0) target = $region21
  $region20: #{egnn_forward.10} parent=0 // pred_region
    _
  $region21: #{egnn_forward.10} parent=0 // pred_fallthru
    _
  // Predicated region
  $region22: #{egnn_forward.10} parent=0 // pred_check
    _
  $region23: #{egnn_forward.10} parent=0 // pred_check_branch
    %23 = sbr.rel (0) target = $region25
  $region24: #{egnn_forward.10} parent=0 // pred_region
    _
  $region25: #{egnn_forward.10} parent=0 // pred_fallthru
    _
  // Predicated region
  $region26: #{egnn_forward.10} parent=0 // pred_check
    _
  $region27: #{egnn_forward.10} parent=0 // pred_check_branch
    %25 = sbr.rel (0) target = $region29
  $region28: #{egnn_forward.10} parent=0 // pred_region
    _
  $region29: #{egnn_forward.10} parent=0 // pred_fallthru
    _
  %v26 = vld [vmem:[%s0] sm:$0xff]
  %v27 = vld [vmem:[%s2] sm:$0xff]
  %v28 = vld [vmem:[%s2 + $0x8] sm:$0xff]
  %v29 = vld [vmem:[%s2 + $0x10] sm:$0xff]
  %v30 = vld [vmem:[%s2 + $0x18] sm:$0xff]
  %v31 = vld [vmem:[%s1] sm:$0xff]
  %v32 = vld [vmem:[%s3] sm:$0xff]
  %v33 = vld [vmem:[%s3 + $0x8] sm:$0xff]
  %v34 = vld [vmem:[%s3 + $0x10] sm:$0xff]
  %v35 = vld [vmem:[%s3 + $0x18] sm:$0xff]
  %vm36 = vcmask 261120
  %v38 = vsel %vm36, %v31, 0
  %40 = vmatprep.subr.mxu0 0.0
  %41 = vmatpush1.msra.mxu0 %v32
  %42 = vmatprep.subr.mxu0 0.0
  %43 = vmatpush1.msra.mxu0 %v33
  %44 = vmatprep.subr.mxu0 0.0
  %45 = vmatpush1.msra.mxu0 %v34
  %46 = vmatprep.subr.mxu0 0.0
  %47 = vmatpush1.msra.mxu0 %v35
  %48 = vmatprep.subr.mxu0 0.0
  %49 = vmatpush1.msra.mxu0 0.0
  %50 = vmatprep.subr.mxu0 0.0
  %51 = vmatpush1.msra.mxu0 0.0
  %52 = vmatprep.subr.mxu0 0.0
  %53 = vmatpush1.msra.mxu0 0.0
  %54 = vmatprep.subr.mxu0 0.0
  %55 = vmatpush1.msra.mxu0 0.0
  %56 = vmatprep.subr.mxu0 0.0
  %57 = vmatpush1.msra.mxu0 0.0
  %58 = vmatprep.subr.mxu0 0.0
  %59 = vmatpush1.msra.mxu0 0.0
  %60 = vmatprep.subr.mxu0 0.0
  %61 = vmatpush1.msra.mxu0 0.0
  %62 = vmatprep.subr.mxu0 0.0
  %63 = vmatpush1.msra.mxu0 0.0
  %64 = vmatprep.subr.mxu0 0.0
  %65 = vmatpush1.msra.mxu0 0.0
  %66 = vmatprep.subr.mxu0 0.0
  %67 = vmatpush1.msra.mxu0 0.0
  %68 = vmatprep.subr.mxu0 0.0
  %69 = vmatpush1.msra.mxu0 0.0
  %70 = vmatprep.subr.mxu0 0.0
  %71 = vmatpush1.msra.mxu0 0.0
  %72 = vmatprep.subr.mxu0 0.0
  %73 = vmatpush1.msra.mxu0 0.0
  %74 = vmatprep.subr.mxu0 0.0
  %75 = vmatpush1.msra.mxu0 0.0
  %76 = vmatprep.subr.mxu0 0.0
  %77 = vmatpush1.msra.mxu0 0.0
  %78 = vmatprep.subr.mxu0 0.0
  %79 = vmatpush1.msra.mxu0 0.0
  %80 = vmatprep.subr.mxu0 0.0
  %81 = vmatpush1.msra.mxu0 0.0
  %82 = vmatprep.subr.mxu0 0.0
  %83 = vmatpush1.msra.mxu0 0.0
  %84 = vmatprep.subr.mxu0 0.0
  %85 = vmatpush1.msra.mxu0 0.0
  %86 = vmatprep.subr.mxu0 0.0
  %87 = vmatpush1.msra.mxu0 0.0
  %88 = vmatprep.subr.mxu0 0.0
  %89 = vmatpush1.msra.mxu0 0.0
  %90 = vmatprep.subr.mxu0 0.0
  %91 = vmatpush1.msra.mxu0 0.0
  %92 = vmatprep.subr.mxu0 0.0
  %93 = vmatpush1.msra.mxu0 0.0
  %94 = vmatprep.subr.mxu0 0.0
  %95 = vmatpush1.msra.mxu0 0.0
  %96 = vmatprep.subr.mxu0 0.0
  %97 = vmatpush1.msra.mxu0 0.0
  %98 = vmatprep.subr.mxu0 0.0
  %99 = vmatpush1.msra.mxu0 0.0
  %100 = vmatprep.subr.mxu0 0.0
  %101 = vmatpush1.msra.mxu0 0.0
  %102 = vmatprep.subr.mxu0 0.0
  %103 = vmatpush1.msra.mxu0 0.0
  %104 = vmatprep.mubr.f32.mxu0 0.0
  %105 = vmatmul.mubr.f32.gmra.mrb[0].mxu0 %v38
  %v106 = vpop.f32.mrb[0].mxu0
  %v107 = vadd.f32 0.0, %v106
  %v108 = vpop.f32.mrb[0].mxu0
  %109 = vdwg.mxu0
  %v111 = vsel %vm36, %v26, 0
  %113 = vmatprep.subr.mxu0 0.0
  %114 = vmatpush1.msra.mxu0 %v27
  %115 = vmatprep.subr.mxu0 0.0
  %116 = vmatpush1.msra.mxu0 %v28
  %117 = vmatprep.subr.mxu0 0.0
  %118 = vmatpush1.msra.mxu0 %v29
  %119 = vmatprep.subr.mxu0 0.0
  %120 = vmatpush1.msra.mxu0 %v30
  %121 = vmatprep.subr.mxu0 0.0
  %122 = vmatpush1.msra.mxu0 0.0
  %123 = vmatprep.subr.mxu0 0.0
  %124 = vmatpush1.msra.mxu0 0.0
  %125 = vmatprep.subr.mxu0 0.0
  %126 = vmatpush1.msra.mxu0 0.0
  %127 = vmatprep.subr.mxu0 0.0
  %128 = vmatpush1.msra.mxu0 0.0
  %129 = vmatprep.subr.mxu0 0.0
  %130 = vmatpush1.msra.mxu0 0.0
  %131 = vmatprep.subr.mxu0 0.0
  %132 = vmatpush1.msra.mxu0 0.0
  %133 = vmatprep.subr.mxu0 0.0
  %134 = vmatpush1.msra.mxu0 0.0
  %135 = vmatprep.subr.mxu0 0.0
  %136 = vmatpush1.msra.mxu0 0.0
  %137 = vmatprep.subr.mxu0 0.0
  %138 = vmatpush1.msra.mxu0 0.0
  %139 = vmatprep.subr.mxu0 0.0
  %140 = vmatpush1.msra.mxu0 0.0
  %141 = vmatprep.subr.mxu0 0.0
  %142 = vmatpush1.msra.mxu0 0.0
  %143 = vmatprep.subr.mxu0 0.0
  %144 = vmatpush1.msra.mxu0 0.0
  %145 = vmatprep.subr.mxu0 0.0
  %146 = vmatpush1.msra.mxu0 0.0
  %147 = vmatprep.subr.mxu0 0.0
  %148 = vmatpush1.msra.mxu0 0.0
  %149 = vmatprep.subr.mxu0 0.0
  %150 = vmatpush1.msra.mxu0 0.0
  %151 = vmatprep.subr.mxu0 0.0
  %152 = vmatpush1.msra.mxu0 0.0
  %153 = vmatprep.subr.mxu0 0.0
  %154 = vmatpush1.msra.mxu0 0.0
  %155 = vmatprep.subr.mxu0 0.0
  %156 = vmatpush1.msra.mxu0 0.0
  %157 = vmatprep.subr.mxu0 0.0
  %158 = vmatpush1.msra.mxu0 0.0
  %159 = vmatprep.subr.mxu0 0.0
  %160 = vmatpush1.msra.mxu0 0.0
  %161 = vmatprep.subr.mxu0 0.0
  %162 = vmatpush1.msra.mxu0 0.0
  %163 = vmatprep.subr.mxu0 0.0
  %164 = vmatpush1.msra.mxu0 0.0
  %165 = vmatprep.subr.mxu0 0.0
  %166 = vmatpush1.msra.mxu0 0.0
  %167 = vmatprep.subr.mxu0 0.0
  %168 = vmatpush1.msra.mxu0 0.0
  %169 = vmatprep.subr.mxu0 0.0
  %170 = vmatpush1.msra.mxu0 0.0
  %171 = vmatprep.subr.mxu0 0.0
  %172 = vmatpush1.msra.mxu0 0.0
  %173 = vmatprep.subr.mxu0 0.0
  %174 = vmatpush1.msra.mxu0 0.0
  %175 = vmatprep.subr.mxu0 0.0
  %176 = vmatpush1.msra.mxu0 0.0
  %177 = vmatprep.mubr.f32.mxu0 0.0
  %178 = vmatmul.mubr.f32.gmra.mrb[0].mxu0 %v111
  %v179 = vpop.f32.mrb[0].mxu0
  %v180 = vadd.f32 %v107, %v179
  %v181 = vpop.f32.mrb[0].mxu0
  %182 = vdwg.mxu0
  %v183 = vld [vmem:[%s4] sm:$0x1]
  %v185 = vlaneseq
  %v186 = vshrl.u32 %v185, 7
  %v187 = vsub.s32 0, %v186
  %v188 = vrot.slane %v183, %v187
  %v190 = vadd.f32 %v180, %v188
  %v191 = vsub.f32 0.0, %v190
  %v192 = vmul.f32 %v191, 1.442695
  %v193 = vpow.pop %v192
  %v194 = vadd.f32 %v193, 1.0
  %v195 = vrcp.pop %v194
  %v196 = vmul.f32 1.0, %v195
  %v197 = vmul.f32 %v190, %v196
  %v198 = vld [vmem:[%s5] sm:$0xff]
  %v199 = vld [vmem:[%s5 + $0x8] sm:$0xff]
  %v200 = vld [vmem:[%s5 + $0x10] sm:$0xff]
  %v201 = vld [vmem:[%s5 + $0x18] sm:$0xff]
  %v202 = vld [vmem:[%s6] sm:$0x1]
  %v204 = vlaneseq
  %v205 = vshrl.u32 %v204, 7
  %v206 = vsub.s32 0, %v205
  %v207 = vrot.slane %v202, %v206
  %v210 = vsel %vm36, %v197, 0
  %212 = vmatprep.subr.mxu0 0.0
  %213 = vmatpush1.msra.mxu0 %v198
  %214 = vmatprep.subr.mxu0 0.0
  %215 = vmatpush1.msra.mxu0 %v199
  %216 = vmatprep.subr.mxu0 0.0
  %217 = vmatpush1.msra.mxu0 %v200
  %218 = vmatprep.subr.mxu0 0.0
  %219 = vmatpush1.msra.mxu0 %v201
  %220 = vmatprep.subr.mxu0 0.0
  %221 = vmatpush1.msra.mxu0 0.0
  %222 = vmatprep.subr.mxu0 0.0
  %223 = vmatpush1.msra.mxu0 0.0
  %224 = vmatprep.subr.mxu0 0.0
  %225 = vmatpush1.msra.mxu0 0.0
  %226 = vmatprep.subr.mxu0 0.0
  %227 = vmatpush1.msra.mxu0 0.0
  %228 = vmatprep.subr.mxu0 0.0
  %229 = vmatpush1.msra.mxu0 0.0
  %230 = vmatprep.subr.mxu0 0.0
  %231 = vmatpush1.msra.mxu0 0.0
  %232 = vmatprep.subr.mxu0 0.0
  %233 = vmatpush1.msra.mxu0 0.0
  %234 = vmatprep.subr.mxu0 0.0
  %235 = vmatpush1.msra.mxu0 0.0
  %236 = vmatprep.subr.mxu0 0.0
  %237 = vmatpush1.msra.mxu0 0.0
  %238 = vmatprep.subr.mxu0 0.0
  %239 = vmatpush1.msra.mxu0 0.0
  %240 = vmatprep.subr.mxu0 0.0
  %241 = vmatpush1.msra.mxu0 0.0
  %242 = vmatprep.subr.mxu0 0.0
  %243 = vmatpush1.msra.mxu0 0.0
  %244 = vmatprep.subr.mxu0 0.0
  %245 = vmatpush1.msra.mxu0 0.0
  %246 = vmatprep.subr.mxu0 0.0
  %247 = vmatpush1.msra.mxu0 0.0
  %248 = vmatprep.subr.mxu0 0.0
  %249 = vmatpush1.msra.mxu0 0.0
  %250 = vmatprep.subr.mxu0 0.0
  %251 = vmatpush1.msra.mxu0 0.0
  %252 = vmatprep.subr.mxu0 0.0
  %253 = vmatpush1.msra.mxu0 0.0
  %254 = vmatprep.subr.mxu0 0.0
  %255 = vmatpush1.msra.mxu0 0.0
  %256 = vmatprep.subr.mxu0 0.0
  %257 = vmatpush1.msra.mxu0 0.0
  %258 = vmatprep.subr.mxu0 0.0
  %259 = vmatpush1.msra.mxu0 0.0
  %260 = vmatprep.subr.mxu0 0.0
  %261 = vmatpush1.msra.mxu0 0.0
  %262 = vmatprep.subr.mxu0 0.0
  %263 = vmatpush1.msra.mxu0 0.0
  %264 = vmatprep.subr.mxu0 0.0
  %265 = vmatpush1.msra.mxu0 0.0
  %266 = vmatprep.subr.mxu0 0.0
  %267 = vmatpush1.msra.mxu0 0.0
  %268 = vmatprep.subr.mxu0 0.0
  %269 = vmatpush1.msra.mxu0 0.0
  %270 = vmatprep.subr.mxu0 0.0
  %271 = vmatpush1.msra.mxu0 0.0
  %272 = vmatprep.subr.mxu0 0.0
  %273 = vmatpush1.msra.mxu0 0.0
  %274 = vmatprep.subr.mxu0 0.0
  %275 = vmatpush1.msra.mxu0 0.0
  %276 = vmatprep.mubr.f32.mxu0 0.0
  %277 = vmatmul.mubr.f32.gmra.mrb[0].mxu0 %v210
  %v278 = vpop.f32.mrb[0].mxu0
  %v279 = vadd.f32 %v207, %v278
  %v280 = vpop.f32.mrb[0].mxu0
  %281 = vdwg.mxu0
  %v282 = vadd.f32 %v26, %v279
  %283 = vst.msk [vmem:[%s7] sm:$0xff] %vm36, %v282
  // Predicated region
  $region30: #{egnn_forward.10} parent=0 // pred_check
    _
  $region31: #{egnn_forward.10} parent=0 // pred_check_branch
    %285 = sbr.rel (0) target = $region33
  $region32: #{egnn_forward.10} parent=0 // pred_region
    _
  $region33: #{egnn_forward.10} parent=0 // pred_fallthru
    _
  // Predicated region
  $region34: #{egnn_forward.10} parent=0 // pred_check
    _
  $region35: #{egnn_forward.10} parent=0 // pred_check_branch
    %287 = sbr.rel (0) target = $region37
  $region36: #{egnn_forward.10} parent=0 // pred_region
    _
  $region37: #{egnn_forward.10} parent=0 // pred_fallthru
    _

// kernel: egnn_forward.15
$region0: #{egnn_forward.15}
  #allocation0 [shape = 'u32[]', space=smem, size = 0x4, offset = 0x4, fixed_abs, tag = 'smem constant byte address 0x4 - core index']
  #allocation1 [shape = 'u32[144,128]{1,0:T(1,128)}', space=vmem, size = 0x12000, scoped, tag = 'internal scratch']
  %s0 = inlined_call_operand.vmem [shape: f32[8,32], index: 0, kind: input, shape index: {}]
  %s1 = inlined_call_operand.vmem [shape: f32[32,5], index: 1, kind: input, shape index: {}]
  %s2 = inlined_call_operand.vmem [shape: f32[1,5], index: 2, kind: input, shape index: {}]
  %s3 = inlined_call_operand.hbm [shape: f32[8,5], index: 3, kind: output, shape index: {}]
  %s4 = sld [smem:[#allocation0]]
  $region22: #{egnn_forward.15} parent=0
    _
  %s6 = ssub.s32 1, %s4
  %s7 = scalar_select 0, %s6, %s4
  $region1: #{egnn_forward.15} parent=0
    #allocation2 [shape = 'u8[4096]{0}', space=vmem, size = 0x1000, scoped, tag = 'output window, operand 0, single buffered']
    #allocation3 [shape = 's32[1]{0}', space=sflag, size = 0x4, scoped, tag = 'scoped memory for egnn_forward.15']
    %8 = vsyncpa [#allocation3], 0
    // Predicated region
    $region2: #{egnn_forward.15} parent=1 // pred_check
      _
    $region3: #{egnn_forward.15} parent=1 // pred_check_branch
      %10 = sbr.rel (0) target = $region5
    $region4: #{egnn_forward.15} parent=1 // pred_region
      _
    $region5: #{egnn_forward.15} parent=1 // pred_fallthru
      _
    // Predicated region
    $region6: #{egnn_forward.15} parent=1 // pred_check
      _
    $region7: #{egnn_forward.15} parent=1 // pred_check_branch
      %12 = sbr.rel (0) target = $region9
    $region8: #{egnn_forward.15} parent=1 // pred_region
      _
    $region9: #{egnn_forward.15} parent=1 // pred_fallthru
      _
    // Predicated region
    $region10: #{egnn_forward.15} parent=1 // pred_check
      _
    $region11: #{egnn_forward.15} parent=1 // pred_check_branch
      %14 = sbr.rel (0) target = $region13
    $region12: #{egnn_forward.15} parent=1 // pred_region
      _
    $region13: #{egnn_forward.15} parent=1 // pred_fallthru
      _
    %v15 = vld [vmem:[%s0] sm:$0xff]
    %v16 = vld [vmem:[%s1] sm:$0xff]
    %v17 = vld [vmem:[%s1 + $0x8] sm:$0xff]
    %v18 = vld [vmem:[%s1 + $0x10] sm:$0xff]
    %v19 = vld [vmem:[%s1 + $0x18] sm:$0xff]
    %v20 = vld [vmem:[%s2] sm:$0x1]
    %v22 = vlaneseq
    %v23 = vshrl.u32 %v22, 7
    %v24 = vsub.s32 0, %v23
    %v25 = vrot.slane %v20, %v24
    %vm27 = vcmask 261120
    %v29 = vsel %vm27, %v15, 0
    %31 = vmatprep.subr.mxu0 0.0
    %32 = vmatpush1.msra.mxu0 %v16
    %33 = vmatprep.subr.mxu0 0.0
    %34 = vmatpush1.msra.mxu0 %v17
    %35 = vmatprep.subr.mxu0 0.0
    %36 = vmatpush1.msra.mxu0 %v18
    %37 = vmatprep.subr.mxu0 0.0
    %38 = vmatpush1.msra.mxu0 %v19
    %39 = vmatprep.subr.mxu0 0.0
    %40 = vmatpush1.msra.mxu0 0.0
    %41 = vmatprep.subr.mxu0 0.0
    %42 = vmatpush1.msra.mxu0 0.0
    %43 = vmatprep.subr.mxu0 0.0
    %44 = vmatpush1.msra.mxu0 0.0
    %45 = vmatprep.subr.mxu0 0.0
    %46 = vmatpush1.msra.mxu0 0.0
    %47 = vmatprep.subr.mxu0 0.0
    %48 = vmatpush1.msra.mxu0 0.0
    %49 = vmatprep.subr.mxu0 0.0
    %50 = vmatpush1.msra.mxu0 0.0
    %51 = vmatprep.subr.mxu0 0.0
    %52 = vmatpush1.msra.mxu0 0.0
    %53 = vmatprep.subr.mxu0 0.0
    %54 = vmatpush1.msra.mxu0 0.0
    %55 = vmatprep.subr.mxu0 0.0
    %56 = vmatpush1.msra.mxu0 0.0
    %57 = vmatprep.subr.mxu0 0.0
    %58 = vmatpush1.msra.mxu0 0.0
    %59 = vmatprep.subr.mxu0 0.0
    %60 = vmatpush1.msra.mxu0 0.0
    %61 = vmatprep.subr.mxu0 0.0
    %62 = vmatpush1.msra.mxu0 0.0
    %63 = vmatprep.subr.mxu0 0.0
    %64 = vmatpush1.msra.mxu0 0.0
    %65 = vmatprep.subr.mxu0 0.0
    %66 = vmatpush1.msra.mxu0 0.0
    %67 = vmatprep.subr.mxu0 0.0
    %68 = vmatpush1.msra.mxu0 0.0
    %69 = vmatprep.subr.mxu0 0.0
    %70 = vmatpush1.msra.mxu0 0.0
    %71 = vmatprep.subr.mxu0 0.0
    %72 = vmatpush1.msra.mxu0 0.0
    %73 = vmatprep.subr.mxu0 0.0
    %74 = vmatpush1.msra.mxu0 0.0
    %75 = vmatprep.subr.mxu0 0.0
    %76 = vmatpush1.msra.mxu0 0.0
    %77 = vmatprep.subr.mxu0 0.0
    %78 = vmatpush1.msra.mxu0 0.0
    %79 = vmatprep.subr.mxu0 0.0
    %80 = vmatpush1.msra.mxu0 0.0
    %81 = vmatprep.subr.mxu0 0.0
    %82 = vmatpush1.msra.mxu0 0.0
    %83 = vmatprep.subr.mxu0 0.0
    %84 = vmatpush1.msra.mxu0 0.0
    %85 = vmatprep.subr.mxu0 0.0
    %86 = vmatpush1.msra.mxu0 0.0
    %87 = vmatprep.subr.mxu0 0.0
    %88 = vmatpush1.msra.mxu0 0.0
    %89 = vmatprep.subr.mxu0 0.0
    %90 = vmatpush1.msra.mxu0 0.0
    %91 = vmatprep.subr.mxu0 0.0
    %92 = vmatpush1.msra.mxu0 0.0
    %93 = vmatprep.subr.mxu0 0.0
    %94 = vmatpush1.msra.mxu0 0.0
    %95 = vmatprep.mubr.f32.mxu0 0.0
    %96 = vmatmul.mubr.f32.gmra.mrb[0].mxu0 %v29
    %v97 = vpop.f32.mrb[0].mxu0
    %v98 = vadd.f32 %v25, %v97
    %v99 = vpop.f32.mrb[0].mxu0
    %100 = vdwg.mxu0
    %vm101 = vcmask 39936
    %102 = vst.msk [vmem:[#allocation2] sm:$0xff] %vm101, %v98
    // Predicated region
    $region14: #{egnn_forward.15} parent=1 // pred_check
      _
    $region15: #{egnn_forward.15} parent=1 // pred_check_branch
      %104 = sbr.rel (0) target = $region17
    $region16: #{egnn_forward.15} parent=1 // pred_region
      %s106 = ssub.s32 128, 128
      %107 = vsyncadd [#allocation3], %s106
      %s109 = sshll.u32 [#allocation2], 4
      %s110 = int_to_ptr.vmem [resolvable:$true] %s109
      %112 = dma.vmem_to_hbm [thread:$0]  %s110, 128, %s3, [#allocation3]
    $region17: #{egnn_forward.15} parent=1 // pred_fallthru
      _
    // Predicated region
    $region18: #{egnn_forward.15} parent=1 // pred_check
      _
    $region19: #{egnn_forward.15} parent=1 // pred_check_branch
      %114 = sbr.rel (0) target = $region21
    $region20: #{egnn_forward.15} parent=1 // pred_region
      %115 = dma.done [#allocation3], 128
    $region21: #{egnn_forward.15} parent=1 // pred_fallthru
      _
    %116 = vsyncpa [#allocation3], 1

</llo_original>
